<compile_context>
chip_gen: v6e
topology: v6e:2x2x1
jax: 0.10.0
libtpu: 0.0.40
codegen_flags: <defaults>
</compile_context>

<pallas_src>
import jax
import jax.numpy as jnp
from jax.experimental import pallas as pl
from jax.experimental.pallas import tpu as pltpu

LANE = 128
SUBLANE = 8
TARGET_BLOCK_BYTES = 2 * 1024 * 1024   # per input buffer (x2 for double-buffering)
NUM_CORES_SPLIT = 2                    # leading "parallel" axis -> both TCs on v7x


def _abs_sum_kernel(x_ref, o_ref):
    """Accumulate sum(|x_block|) (f32) into this core's (8,128) output block."""
    j = pl.program_id(1)  # reduction ("arbitrary") axis

    @pl.when(j == 0)
    def _init():
        o_ref[...] = jnp.zeros_like(o_ref)

    partial = jnp.sum(jnp.abs(x_ref[...].astype(jnp.float32)))
    o_ref[0:1, 0:1] += partial


def _pick_leading_tile(shape, itemsize):
    """Largest divisor of shape[0] such that one block is <= TARGET_BLOCK_BYTES.

    For 2-D inputs the second-to-last block dim must be a multiple of 8 or the
    full dim (TPU (8,128) tiling rule).
    """
    d0 = int(shape[0])
    row_elems = 1
    for s in shape[1:]:
        row_elems *= int(s)
    row_bytes = max(1, row_elems * int(itemsize))
    max_rows = max(1, TARGET_BLOCK_BYTES // row_bytes)

    divisors = [d for d in range(1, d0 + 1) if d0 % d == 0]
    divisors = [d for d in divisors if (d % SUBLANE == 0) or (d == d0)]
    fitting = [d for d in divisors if d <= max_rows]
    return max(fitting) if fitting else min(divisors)


def _abs_sum_param(p):
    """sum(|p|) in f32 via a Pallas kernel on p's bytes (native dtype)."""
    if p.size == 0:
        return jnp.float32(0.0)
    # Collapse to 2-D (row-major, contiguous -> free bitcast in XLA):
    #   ndim <= 1  -> (1, size)
    #   ndim >= 2  -> (shape[0], prod(shape[1:]))
    if p.ndim < 2:
        p = p.reshape(1, -1)
    elif p.ndim > 2:
        p = p.reshape(p.shape[0], -1)

    d0, d1 = int(p.shape[0]), int(p.shape[1])
    tile = _pick_leading_tile(p.shape, p.dtype.itemsize)
    num_blocks = d0 // tile

    if num_blocks >= NUM_CORES_SPLIT and num_blocks % NUM_CORES_SPLIT == 0:
        ncore = NUM_CORES_SPLIT
    else:
        ncore = 1
    blocks_per_core = num_blocks // ncore

    def in_index(c, j, _bpc=blocks_per_core):
        return (c * _bpc + j, 0)

    def out_index(c, j):
        return (c, 0)

    cost = pl.CostEstimate(
        flops=2 * int(p.size),
        transcendentals=0,
        bytes_accessed=int(p.size) * int(p.dtype.itemsize)
        + ncore * SUBLANE * LANE * 4,
    )

    partials = pl.pallas_call(
        _abs_sum_kernel,
        out_shape=jax.ShapeDtypeStruct((ncore * SUBLANE, LANE), jnp.float32),
        grid_spec=pltpu.PrefetchScalarGridSpec(
            num_scalar_prefetch=0,
            grid=(ncore, blocks_per_core),
            in_specs=[pl.BlockSpec((tile, d1), in_index)],
            out_specs=pl.BlockSpec((SUBLANE, LANE), out_index),
        ),
        compiler_params=pltpu.CompilerParams(
            dimension_semantics=("parallel", "arbitrary"),
        ),
        cost_estimate=cost,
    )(p)

    return jnp.sum(partials)


@jax.jit
def reg_l1_loss(params, lamda):
    """forward(): lamda * sum_i sum(|param_i|) / n"""
    n = len(params)
    total = jnp.float32(0.0)
    for p in params:
        total = total + _abs_sum_param(p)
    return lamda * total / n


if __name__ == "__main__":
    key = jax.random.PRNGKey(0)
    k1, k2, k3, k4 = jax.random.split(key, 4)

    # Deterministic synthetic "module parameters":
    #  - conv weight, linear weight, bias (single-block path)
    #  - a larger linear weight exercising the tiled + 2-way-parallel path
    params = [
        jax.random.normal(k1, (4, 4, 3, 3), dtype=jnp.float32),    # conv weight
        jax.random.normal(k2, (32, 16), dtype=jnp.float32),        # linear weight
        jax.random.normal(k3, (16,), dtype=jnp.float32),           # bias
        jax.random.normal(k4, (1024, 1024), dtype=jnp.float32),    # larger weight
    ]
    lamda = jnp.float32(0.05)

    loss = reg_l1_loss(params, lamda)
    loss = jax.block_until_ready(loss)

    # Pure-JAX reference matching the PyTorch forward exactly.
    n = len(params)
    ref = lamda * sum(jnp.sum(jnp.abs(p.astype(jnp.float32))) for p in params) / n

    assert jnp.allclose(loss, ref, rtol=1e-5, atol=1e-3), (loss, ref)
    print("KERNEL_OK")
</pallas_src>

<mosaic_0001>
module attributes {stable_mosaic.version = 11 : i64} {
  func.func @_abs_sum_kernel(%arg0: i32, %arg1: i32, %arg2: memref<4x36xf32, #tpu.memory_space<vmem>>, %arg3: memref<8x128xf32, #tpu.memory_space<vmem>>) attributes {dimension_semantics = [#tpu.dimension_semantics<parallel>, #tpu.dimension_semantics<arbitrary>], iteration_bounds = array<i64: 1, 1>, scalar_prefetch = 0 : i64, scratch_operands = 0 : i64, tpu.core_type = #tpu.core_type<tc>, window_params = [{transform_indices = @transform_0, window_bounds = array<i64: 4, 36>}, {transform_indices = @transform_1, window_bounds = array<i64: 8, 128>}]} {
    %c0_i32 = arith.constant 0 : i32
    %0 = arith.cmpi eq, %arg1, %c0_i32 : i32
    %1 = arith.extui %0 : i1 to i32
    %c0_i32_0 = arith.constant 0 : i32
    %2 = arith.cmpi ne, %1, %c0_i32_0 : i32
    scf.if %2 {
      %cst_6 = arith.constant 0.000000e+00 : f32
      %13 = vector.broadcast %cst_6 : f32 to vector<8x128xf32>
      %c0_7 = arith.constant 0 : index
      %c0_8 = arith.constant 0 : index
      %14 = vector.load %arg3[%c0_7, %c0_8] : memref<8x128xf32, #tpu.memory_space<vmem>>, vector<8x128xf32>
      tpu.vector_store %arg3[%c0_7, %c0_8], %13 {strides = array<i32>} : memref<8x128xf32, #tpu.memory_space<vmem>>, vector<8x128xf32>,
    } else {
    }
    %c0 = arith.constant 0 : index
    %c0_1 = arith.constant 0 : index
    %3 = vector.load %arg2[%c0, %c0_1] : memref<4x36xf32, #tpu.memory_space<vmem>>, vector<4x36xf32>
    %4 = math.absf %3 : vector<4x36xf32>
    %5 = vector.shape_cast %4 : vector<4x36xf32> to vector<1x4x36xf32>
    %cst = arith.constant dense<0.000000e+00> : vector<1xf32>
    %6 = vector.multi_reduction <add>, %5, %cst [1, 2] : vector<1x4x36xf32> to vector<1xf32>
    %7 = vector.shape_cast %6 : vector<1xf32> to vector<1x1x1xf32>
    %8 = vector.extract %7[0, 0, 0] : f32 from vector<1x1x1xf32>
    %c0_2 = arith.constant 0 : index
    %c0_3 = arith.constant 0 : index
    %9 = vector.load %arg3[%c0_2, %c0_3] : memref<8x128xf32, #tpu.memory_space<vmem>>, vector<1x1xf32>
    %10 = vector.broadcast %8 : f32 to vector<1x1xf32>
    %11 = arith.addf %9, %10 : vector<1x1xf32>
    %c0_4 = arith.constant 0 : index
    %c0_5 = arith.constant 0 : index
    %12 = vector.load %arg3[%c0_4, %c0_5] : memref<8x128xf32, #tpu.memory_space<vmem>>, vector<1x1xf32>
    tpu.vector_store %arg3[%c0_4, %c0_5], %11 {strides = array<i32>} : memref<8x128xf32, #tpu.memory_space<vmem>>, vector<1x1xf32>,
    return
  }
  func.func @transform_0(%arg0: i32, %arg1: i32) -> (i32, i32) {
    %c1_i32 = arith.constant 1 : i32
    %0 = arith.muli %arg0, %c1_i32 : i32
    %1 = arith.addi %0, %arg1 : i32
    %c0_i32 = arith.constant 0 : i32
    %c0_i32_0 = arith.constant 0 : i32
    return %1, %c0_i32 : i32, i32
  }
  func.func @transform_1(%arg0: i32, %arg1: i32) -> (i32, i32) {
    %c0_i32 = arith.constant 0 : i32
    %c0_i32_0 = arith.constant 0 : i32
    return %arg0, %c0_i32 : i32, i32
  }
}

module attributes {stable_mosaic.version = 11 : i64} {
  func.func @_abs_sum_kernel(%arg0: i32, %arg1: i32, %arg2: memref<1x16xf32, #tpu.memory_space<vmem>>, %arg3: memref<8x128xf32, #tpu.memory_space<vmem>>) attributes {dimension_semantics = [#tpu.dimension_semantics<parallel>, #tpu.dimension_semantics<arbitrary>], iteration_bounds = array<i64: 1, 1>, scalar_prefetch = 0 : i64, scratch_operands = 0 : i64, tpu.core_type = #tpu.core_type<tc>, window_params = [{transform_indices = @transform_0, window_bounds = array<i64: 1, 16>}, {transform_indices = @transform_1, window_bounds = array<i64: 8, 128>}]} {
    %c0_i32 = arith.constant 0 : i32
    %0 = arith.cmpi eq, %arg1, %c0_i32 : i32
    %1 = arith.extui %0 : i1 to i32
    %c0_i32_0 = arith.constant 0 : i32
    %2 = arith.cmpi ne, %1, %c0_i32_0 : i32
    scf.if %2 {
      %cst_6 = arith.constant 0.000000e+00 : f32
      %13 = vector.broadcast %cst_6 : f32 to vector<8x128xf32>
      %c0_7 = arith.constant 0 : index
      %c0_8 = arith.constant 0 : index
      %14 = vector.load %arg3[%c0_7, %c0_8] : memref<8x128xf32, #tpu.memory_space<vmem>>, vector<8x128xf32>
      tpu.vector_store %arg3[%c0_7, %c0_8], %13 {strides = array<i32>} : memref<8x128xf32, #tpu.memory_space<vmem>>, vector<8x128xf32>,
    } else {
    }
    %c0 = arith.constant 0 : index
    %c0_1 = arith.constant 0 : index
    %3 = vector.load %arg2[%c0, %c0_1] : memref<1x16xf32, #tpu.memory_space<vmem>>, vector<1x16xf32>
    %4 = math.absf %3 : vector<1x16xf32>
    %5 = vector.shape_cast %4 : vector<1x16xf32> to vector<1x1x16xf32>
    %cst = arith.constant dense<0.000000e+00> : vector<1xf32>
    %6 = vector.multi_reduction <add>, %5, %cst [1, 2] : vector<1x1x16xf32> to vector<1xf32>
    %7 = vector.shape_cast %6 : vector<1xf32> to vector<1x1x1xf32>
    %8 = vector.extract %7[0, 0, 0] : f32 from vector<1x1x1xf32>
    %c0_2 = arith.constant 0 : index
    %c0_3 = arith.constant 0 : index
    %9 = vector.load %arg3[%c0_2, %c0_3] : memref<8x128xf32, #tpu.memory_space<vmem>>, vector<1x1xf32>
    %10 = vector.broadcast %8 : f32 to vector<1x1xf32>
    %11 = arith.addf %9, %10 : vector<1x1xf32>
    %c0_4 = arith.constant 0 : index
    %c0_5 = arith.constant 0 : index
    %12 = vector.load %arg3[%c0_4, %c0_5] : memref<8x128xf32, #tpu.memory_space<vmem>>, vector<1x1xf32>
    tpu.vector_store %arg3[%c0_4, %c0_5], %11 {strides = array<i32>} : memref<8x128xf32, #tpu.memory_space<vmem>>, vector<1x1xf32>,
    return
  }
  func.func @transform_0(%arg0: i32, %arg1: i32) -> (i32, i32) {
    %c1_i32 = arith.constant 1 : i32
    %0 = arith.muli %arg0, %c1_i32 : i32
    %1 = arith.addi %0, %arg1 : i32
    %c0_i32 = arith.constant 0 : i32
    %c0_i32_0 = arith.constant 0 : i32
    return %1, %c0_i32 : i32, i32
  }
  func.func @transform_1(%arg0: i32, %arg1: i32) -> (i32, i32) {
    %c0_i32 = arith.constant 0 : i32
    %c0_i32_0 = arith.constant 0 : i32
    return %arg0, %c0_i32 : i32, i32
  }
}

module attributes {stable_mosaic.version = 11 : i64} {
  func.func @_abs_sum_kernel(%arg0: i32, %arg1: i32, %arg2: memref<32x16xf32, #tpu.memory_space<vmem>>, %arg3: memref<8x128xf32, #tpu.memory_space<vmem>>) attributes {dimension_semantics = [#tpu.dimension_semantics<parallel>, #tpu.dimension_semantics<arbitrary>], iteration_bounds = array<i64: 1, 1>, scalar_prefetch = 0 : i64, scratch_operands = 0 : i64, tpu.core_type = #tpu.core_type<tc>, window_params = [{transform_indices = @transform_0, window_bounds = array<i64: 32, 16>}, {transform_indices = @transform_1, window_bounds = array<i64: 8, 128>}]} {
    %c0_i32 = arith.constant 0 : i32
    %0 = arith.cmpi eq, %arg1, %c0_i32 : i32
    %1 = arith.extui %0 : i1 to i32
    %c0_i32_0 = arith.constant 0 : i32
    %2 = arith.cmpi ne, %1, %c0_i32_0 : i32
    scf.if %2 {
      %cst_6 = arith.constant 0.000000e+00 : f32
      %13 = vector.broadcast %cst_6 : f32 to vector<8x128xf32>
      %c0_7 = arith.constant 0 : index
      %c0_8 = arith.constant 0 : index
      %14 = vector.load %arg3[%c0_7, %c0_8] : memref<8x128xf32, #tpu.memory_space<vmem>>, vector<8x128xf32>
      tpu.vector_store %arg3[%c0_7, %c0_8], %13 {strides = array<i32>} : memref<8x128xf32, #tpu.memory_space<vmem>>, vector<8x128xf32>,
    } else {
    }
    %c0 = arith.constant 0 : index
    %c0_1 = arith.constant 0 : index
    %3 = vector.load %arg2[%c0, %c0_1] : memref<32x16xf32, #tpu.memory_space<vmem>>, vector<32x16xf32>
    %4 = math.absf %3 : vector<32x16xf32>
    %5 = vector.shape_cast %4 : vector<32x16xf32> to vector<1x32x16xf32>
    %cst = arith.constant dense<0.000000e+00> : vector<1xf32>
    %6 = vector.multi_reduction <add>, %5, %cst [1, 2] : vector<1x32x16xf32> to vector<1xf32>
    %7 = vector.shape_cast %6 : vector<1xf32> to vector<1x1x1xf32>
    %8 = vector.extract %7[0, 0, 0] : f32 from vector<1x1x1xf32>
    %c0_2 = arith.constant 0 : index
    %c0_3 = arith.constant 0 : index
    %9 = vector.load %arg3[%c0_2, %c0_3] : memref<8x128xf32, #tpu.memory_space<vmem>>, vector<1x1xf32>
    %10 = vector.broadcast %8 : f32 to vector<1x1xf32>
    %11 = arith.addf %9, %10 : vector<1x1xf32>
    %c0_4 = arith.constant 0 : index
    %c0_5 = arith.constant 0 : index
    %12 = vector.load %arg3[%c0_4, %c0_5] : memref<8x128xf32, #tpu.memory_space<vmem>>, vector<1x1xf32>
    tpu.vector_store %arg3[%c0_4, %c0_5], %11 {strides = array<i32>} : memref<8x128xf32, #tpu.memory_space<vmem>>, vector<1x1xf32>,
    return
  }
  func.func @transform_0(%arg0: i32, %arg1: i32) -> (i32, i32) {
    %c1_i32 = arith.constant 1 : i32
    %0 = arith.muli %arg0, %c1_i32 : i32
    %1 = arith.addi %0, %arg1 : i32
    %c0_i32 = arith.constant 0 : i32
    %c0_i32_0 = arith.constant 0 : i32
    return %1, %c0_i32 : i32, i32
  }
  func.func @transform_1(%arg0: i32, %arg1: i32) -> (i32, i32) {
    %c0_i32 = arith.constant 0 : i32
    %c0_i32_0 = arith.constant 0 : i32
    return %arg0, %c0_i32 : i32, i32
  }
}

module attributes {stable_mosaic.version = 11 : i64} {
  func.func @_abs_sum_kernel(%arg0: i32, %arg1: i32, %arg2: memref<512x1024xf32, #tpu.memory_space<vmem>>, %arg3: memref<8x128xf32, #tpu.memory_space<vmem>>) attributes {dimension_semantics = [#tpu.dimension_semantics<parallel>, #tpu.dimension_semantics<arbitrary>], iteration_bounds = array<i64: 2, 1>, scalar_prefetch = 0 : i64, scratch_operands = 0 : i64, tpu.core_type = #tpu.core_type<tc>, window_params = [{transform_indices = @transform_0, window_bounds = array<i64: 512, 1024>}, {transform_indices = @transform_1, window_bounds = array<i64: 8, 128>}]} {
    %c0_i32 = arith.constant 0 : i32
    %0 = arith.cmpi eq, %arg1, %c0_i32 : i32
    %1 = arith.extui %0 : i1 to i32
    %c0_i32_0 = arith.constant 0 : i32
    %2 = arith.cmpi ne, %1, %c0_i32_0 : i32
    scf.if %2 {
      %cst_6 = arith.constant 0.000000e+00 : f32
      %13 = vector.broadcast %cst_6 : f32 to vector<8x128xf32>
      %c0_7 = arith.constant 0 : index
      %c0_8 = arith.constant 0 : index
      %14 = vector.load %arg3[%c0_7, %c0_8] : memref<8x128xf32, #tpu.memory_space<vmem>>, vector<8x128xf32>
      tpu.vector_store %arg3[%c0_7, %c0_8], %13 {strides = array<i32>} : memref<8x128xf32, #tpu.memory_space<vmem>>, vector<8x128xf32>,
    } else {
    }
    %c0 = arith.constant 0 : index
    %c0_1 = arith.constant 0 : index
    %3 = vector.load %arg2[%c0, %c0_1] : memref<512x1024xf32, #tpu.memory_space<vmem>>, vector<512x1024xf32>
    %4 = math.absf %3 : vector<512x1024xf32>
    %5 = vector.shape_cast %4 : vector<512x1024xf32> to vector<1x512x1024xf32>
    %cst = arith.constant dense<0.000000e+00> : vector<1xf32>
    %6 = vector.multi_reduction <add>, %5, %cst [1, 2] : vector<1x512x1024xf32> to vector<1xf32>
    %7 = vector.shape_cast %6 : vector<1xf32> to vector<1x1x1xf32>
    %8 = vector.extract %7[0, 0, 0] : f32 from vector<1x1x1xf32>
    %c0_2 = arith.constant 0 : index
    %c0_3 = arith.constant 0 : index
    %9 = vector.load %arg3[%c0_2, %c0_3] : memref<8x128xf32, #tpu.memory_space<vmem>>, vector<1x1xf32>
    %10 = vector.broadcast %8 : f32 to vector<1x1xf32>
    %11 = arith.addf %9, %10 : vector<1x1xf32>
    %c0_4 = arith.constant 0 : index
    %c0_5 = arith.constant 0 : index
    %12 = vector.load %arg3[%c0_4, %c0_5] : memref<8x128xf32, #tpu.memory_space<vmem>>, vector<1x1xf32>
    tpu.vector_store %arg3[%c0_4, %c0_5], %11 {strides = array<i32>} : memref<8x128xf32, #tpu.memory_space<vmem>>, vector<1x1xf32>,
    return
  }
  func.func @transform_0(%arg0: i32, %arg1: i32) -> (i32, i32) {
    %c1_i32 = arith.constant 1 : i32
    %0 = arith.muli %arg0, %c1_i32 : i32
    %1 = arith.addi %0, %arg1 : i32
    %c0_i32 = arith.constant 0 : i32
    %c0_i32_0 = arith.constant 0 : i32
    return %1, %c0_i32 : i32, i32
  }
  func.func @transform_1(%arg0: i32, %arg1: i32) -> (i32, i32) {
    %c0_i32 = arith.constant 0 : i32
    %c0_i32_0 = arith.constant 0 : i32
    return %arg0, %c0_i32 : i32, i32
  }
}

</mosaic_0001>

<llo_original>
// kernel: reg_l1_loss.4
$region0: #{reg_l1_loss.4}
  #allocation0 [shape = 'u32[]', space=smem, size = 0x4, offset = 0x4, fixed_abs, tag = 'smem constant byte address 0x4 - core index']
  #allocation1 [shape = 'u32[144,128]{1,0:T(1,128)}', space=vmem, size = 0x12000, scoped, tag = 'internal scratch']
  %s0 = inlined_call_operand.vmem [shape: f32[4,36], index: 0, kind: input, shape index: {}]
  %s1 = inlined_call_operand.vmem [shape: f32[8,128], index: 1, kind: output, shape index: {}]
  %s2 = sld [smem:[#allocation0]]
  $region18: #{reg_l1_loss.4} parent=0
    _
  %s4 = ssub.s32 1, %s2
  %s5 = scalar_select 0, %s4, %s2
  // Predicated region
  $region2: #{reg_l1_loss.4} parent=0 // pred_check
    _
  $region3: #{reg_l1_loss.4} parent=0 // pred_check_branch
    %7 = sbr.rel (0) target = $region5
  $region4: #{reg_l1_loss.4} parent=0 // pred_region
    %s8 = sadd.s32 0, 0
    %p9 = scmp.lt.s32.totalorder %s8, 0
    %s10 = scalar_select %p9, %s8, 0
    %s11 = smul.addr %s10, 4
    %s12 = scalar_lea.vmem %s0, %s11
    %s13 = sadd.s32 0, 0
  $region5: #{reg_l1_loss.4} parent=0 // pred_fallthru
    _
  %s14 = sadd.s32 0, 0
  %p15 = scmp.lt.s32.totalorder %s14, 0
  %s16 = scalar_select %p15, %s14, 0
  %s17 = smul.addr %s16, 4
  %s18 = scalar_lea.vmem %s0, %s17
  %s19 = sadd.s32 0, 0
  %p20 = scmp.lt.s32.totalorder %s19, 0
  %s21 = scalar_select %p20, %s19, 0
  %s22 = smul.addr %s21, 4
  %s23 = scalar_lea.vmem %s0, %s22
  %s24 = sadd.s32 0, 0
  %p25 = scmp.eq.s32.totalorder 0, 0
  // Predicated region
  $region6: #{reg_l1_loss.4} parent=0 // pred_check
    %p26 = pneg %p25
  $region7: #{reg_l1_loss.4} parent=0 // pred_check_branch
    %28 = sbr.rel (%p26) target = $region9
  $region8: #{reg_l1_loss.4} parent=0 // pred_region
    %29 = vst [vmem:[%s1] sm:$0xff] 0.0
  $region9: #{reg_l1_loss.4} parent=0 // pred_fallthru
    _
  %v30 = vld [vmem:[%s23] sm:$0xf]
  %v31 = vand.u32 2147483647, %v30
  %vm32 = vcmask 289792
  %v33 = vsel %vm32, %v31, 0.0
  %34 = vadd.xlane.f32.xlu0 %v33
  %v35 = vpop.xlane.xlu0 %34
  %v36 = vrot.slane %v35, 4
  %v37 = vadd.f32 %v35, %v36
  %v38 = vrot.slane %v37, 2
  %v39 = vadd.f32 %v37, %v38
  %v40 = vrot.slane %v39, 1
  %v41 = vadd.f32 %v39, %v40
  %s42 = vtos %v41
  %v43 = vld [vmem:[%s1] sm:$0x1]
  %v44 = vstv %s42
  %v45 = vadd.f32 %v43, %v44
  %vm46 = vcmask 0
  %47 = vst.msk [vmem:[%s1] sm:$0x1] %vm46, %v45
  // Predicated region
  $region10: #{reg_l1_loss.4} parent=0 // pred_check
    _
  $region11: #{reg_l1_loss.4} parent=0 // pred_check_branch
    %49 = sbr.rel (0) target = $region13
  $region12: #{reg_l1_loss.4} parent=0 // pred_region
    _
  $region13: #{reg_l1_loss.4} parent=0 // pred_fallthru
    _
  // Predicated region
  $region14: #{reg_l1_loss.4} parent=0 // pred_check
    _
  $region15: #{reg_l1_loss.4} parent=0 // pred_check_branch
    %51 = sbr.rel (0) target = $region17
  $region16: #{reg_l1_loss.4} parent=0 // pred_region
    _
  $region17: #{reg_l1_loss.4} parent=0 // pred_fallthru
    _

// kernel: reg_l1_loss.6
$region0: #{reg_l1_loss.6}
  #allocation0 [shape = 'u32[]', space=smem, size = 0x4, offset = 0x4, fixed_abs, tag = 'smem constant byte address 0x4 - core index']
  #allocation1 [shape = 'u32[144,128]{1,0:T(1,128)}', space=vmem, size = 0x12000, scoped, tag = 'internal scratch']
  %s0 = inlined_call_operand.hbm [shape: f32[1,16], index: 0, kind: input, shape index: {}]
  %s1 = inlined_call_operand.vmem [shape: f32[8,128], index: 1, kind: output, shape index: {}]
  %s2 = sld [smem:[#allocation0]]
  $region22: #{reg_l1_loss.6} parent=0
    _
  %s4 = ssub.s32 1, %s2
  %s5 = scalar_select 0, %s4, %s2
  $region1: #{reg_l1_loss.6} parent=0
    #allocation2 [shape = 'u8[512]{0}', space=vmem, size = 0x400, scoped, tag = 'input window, operand 0, single buffered']
    #allocation3 [shape = 's32[1]{0}', space=sflag, size = 0x4, scoped, tag = 'scoped memory for reg_l1_loss.6']
    %6 = vsyncpa [#allocation3], 0
    // Predicated region
    $region2: #{reg_l1_loss.6} parent=1 // pred_check
      _
    $region3: #{reg_l1_loss.6} parent=1 // pred_check_branch
      %8 = sbr.rel (0) target = $region5
    $region4: #{reg_l1_loss.6} parent=1 // pred_region
      %s9 = sadd.s32 0, 0
      %s11 = ssub.s32 16, 16
      %12 = vsyncadd [#allocation3], %s11
      %s13 = smul.addr %s9, 16
      %s14 = scalar_lea.hbm %s0, %s13
      %s16 = sshll.u32 [#allocation2], 4
      %s17 = int_to_ptr.vmem [resolvable:$true] %s16
      %19 = dma.hbm_to_vmem [thread:$0]  %s14, 16, %s17, [#allocation3]
    $region5: #{reg_l1_loss.6} parent=1 // pred_fallthru
      _
    // Predicated region
    $region6: #{reg_l1_loss.6} parent=1 // pred_check
      _
    $region7: #{reg_l1_loss.6} parent=1 // pred_check_branch
      %21 = sbr.rel (0) target = $region9
    $region8: #{reg_l1_loss.6} parent=1 // pred_region
      %22 = dma.done [#allocation3], 16
    $region9: #{reg_l1_loss.6} parent=1 // pred_fallthru
      _
    %s23 = sadd.s32 0, 0
    %p24 = scmp.eq.s32.totalorder 0, 0
    // Predicated region
    $region10: #{reg_l1_loss.6} parent=1 // pred_check
      %p25 = pneg %p24
    $region11: #{reg_l1_loss.6} parent=1 // pred_check_branch
      %27 = sbr.rel (%p25) target = $region13
    $region12: #{reg_l1_loss.6} parent=1 // pred_region
      %28 = vst [vmem:[%s1] sm:$0xff] 0.0
    $region13: #{reg_l1_loss.6} parent=1 // pred_fallthru
      _
    %v29 = vld [vmem:[#allocation2] sm:$0x1]
    %v30 = vand.u32 2147483647, %v29
    %vm31 = vcmask 122880
    %v32 = vsel %vm31, %v30, 0.0
    %33 = vadd.xlane.f32.xlu0 %v32
    %v34 = vpop.xlane.xlu0 %33
    %v35 = vrot.slane %v34, 4
    %v36 = vadd.f32 %v34, %v35
    %v37 = vrot.slane %v36, 2
    %v38 = vadd.f32 %v36, %v37
    %v39 = vrot.slane %v38, 1
    %v40 = vadd.f32 %v38, %v39
    %s41 = vtos %v40
    %v42 = vld [vmem:[%s1] sm:$0x1]
    %v43 = vstv %s41
    %v44 = vadd.f32 %v42, %v43
    %vm45 = vcmask 0
    %46 = vst.msk [vmem:[%s1] sm:$0x1] %vm45, %v44
    // Predicated region
    $region14: #{reg_l1_loss.6} parent=1 // pred_check
      _
    $region15: #{reg_l1_loss.6} parent=1 // pred_check_branch
      %48 = sbr.rel (0) target = $region17
    $region16: #{reg_l1_loss.6} parent=1 // pred_region
      _
    $region17: #{reg_l1_loss.6} parent=1 // pred_fallthru
      _
    // Predicated region
    $region18: #{reg_l1_loss.6} parent=1 // pred_check
      _
    $region19: #{reg_l1_loss.6} parent=1 // pred_check_branch
      %50 = sbr.rel (0) target = $region21
    $region20: #{reg_l1_loss.6} parent=1 // pred_region
      _
    $region21: #{reg_l1_loss.6} parent=1 // pred_fallthru
      _
    %51 = vsyncpa [#allocation3], 1

// kernel: reg_l1_loss.5
$region0: #{reg_l1_loss.5}
  #allocation0 [shape = 'u32[]', space=smem, size = 0x4, offset = 0x4, fixed_abs, tag = 'smem constant byte address 0x4 - core index']
  #allocation1 [shape = 'u32[144,128]{1,0:T(1,128)}', space=vmem, size = 0x12000, scoped, tag = 'internal scratch']
  %s0 = inlined_call_operand.vmem [shape: f32[32,16], index: 0, kind: input, shape index: {}]
  %s1 = inlined_call_operand.vmem [shape: f32[8,128], index: 1, kind: output, shape index: {}]
  %s2 = sld [smem:[#allocation0]]
  $region18: #{reg_l1_loss.5} parent=0
    _
  %s4 = ssub.s32 1, %s2
  %s5 = scalar_select 0, %s4, %s2
  // Predicated region
  $region2: #{reg_l1_loss.5} parent=0 // pred_check
    _
  $region3: #{reg_l1_loss.5} parent=0 // pred_check_branch
    %7 = sbr.rel (0) target = $region5
  $region4: #{reg_l1_loss.5} parent=0 // pred_region
    %s8 = sadd.s32 0, 0
    %s9 = smul.u32 4, %s8
    %p10 = scmp.lt.s32.totalorder %s9, 3
    %s11 = scalar_select %p10, %s9, 3
    %s12 = smul.addr %s11, 8
    %s13 = scalar_lea.vmem %s0, %s12
    %s14 = sadd.s32 0, 0
    %s15 = smul.u32 4, %s14
  $region5: #{reg_l1_loss.5} parent=0 // pred_fallthru
    _
  %s16 = sadd.s32 0, 0
  %s17 = smul.u32 4, %s16
  %p18 = scmp.lt.s32.totalorder %s17, 3
  %s19 = scalar_select %p18, %s17, 3
  %s20 = smul.addr %s19, 8
  %s21 = scalar_lea.vmem %s0, %s20
  %s22 = sadd.s32 0, 0
  %s23 = smul.u32 4, %s22
  %p24 = scmp.lt.s32.totalorder %s23, 3
  %s25 = scalar_select %p24, %s23, 3
  %s26 = smul.addr %s25, 8
  %s27 = scalar_lea.vmem %s0, %s26
  %s28 = sadd.s32 0, 0
  %s29 = smul.u32 4, %s28
  %p30 = scmp.eq.s32.totalorder 0, 0
  // Predicated region
  $region6: #{reg_l1_loss.5} parent=0 // pred_check
    %p31 = pneg %p30
  $region7: #{reg_l1_loss.5} parent=0 // pred_check_branch
    %33 = sbr.rel (%p31) target = $region9
  $region8: #{reg_l1_loss.5} parent=0 // pred_region
    %34 = vst [vmem:[%s1] sm:$0xff] 0.0
  $region9: #{reg_l1_loss.5} parent=0 // pred_fallthru
    _
  %v35 = vld [vmem:[%s27] sm:$0xff]
  %v36 = vld [vmem:[%s27 + $0x8] sm:$0xff]
  %v37 = vld [vmem:[%s27 + $0x10] sm:$0xff]
  %v38 = vld [vmem:[%s27 + $0x18] sm:$0xff]
  %v39 = vand.u32 2147483647, %v35
  %v40 = vand.u32 2147483647, %v36
  %v41 = vand.u32 2147483647, %v37
  %v42 = vand.u32 2147483647, %v38
  %vm43 = vcmask 130048
  %v44 = vsel %vm43, %v39, 0.0
  %v45 = vsel %vm43, %v40, 0.0
  %v46 = vadd.f32 %v44, %v45
  %v47 = vsel %vm43, %v41, 0.0
  %v48 = vadd.f32 %v46, %v47
  %v49 = vsel %vm43, %v42, 0.0
  %v50 = vadd.f32 %v48, %v49
  %51 = vadd.xlane.f32.xlu0 %v50
  %v52 = vpop.xlane.xlu0 %51
  %v53 = vrot.slane %v52, 4
  %v54 = vadd.f32 %v52, %v53
  %v55 = vrot.slane %v54, 2
  %v56 = vadd.f32 %v54, %v55
  %v57 = vrot.slane %v56, 1
  %v58 = vadd.f32 %v56, %v57
  %s59 = vtos %v58
  %v60 = vld [vmem:[%s1] sm:$0x1]
  %v61 = vstv %s59
  %v62 = vadd.f32 %v60, %v61
  %vm63 = vcmask 0
  %64 = vst.msk [vmem:[%s1] sm:$0x1] %vm63, %v62
  // Predicated region
  $region10: #{reg_l1_loss.5} parent=0 // pred_check
    _
  $region11: #{reg_l1_loss.5} parent=0 // pred_check_branch
    %66 = sbr.rel (0) target = $region13
  $region12: #{reg_l1_loss.5} parent=0 // pred_region
    _
  $region13: #{reg_l1_loss.5} parent=0 // pred_fallthru
    _
  // Predicated region
  $region14: #{reg_l1_loss.5} parent=0 // pred_check
    _
  $region15: #{reg_l1_loss.5} parent=0 // pred_check_branch
    %68 = sbr.rel (0) target = $region17
  $region16: #{reg_l1_loss.5} parent=0 // pred_region
    _
  $region17: #{reg_l1_loss.5} parent=0 // pred_fallthru
    _

// kernel: reg_l1_loss.7
$region0: #{reg_l1_loss.7}
  #allocation0 [shape = 'u32[]', space=smem, size = 0x4, offset = 0x4, fixed_abs, tag = 'smem constant byte address 0x4 - core index']
  #allocation1 [shape = 'u32[144,128]{1,0:T(1,128)}', space=vmem, size = 0x12000, scoped, tag = 'internal scratch']
  %s0 = inlined_call_operand.hbm [shape: f32[1024,1024], index: 0, kind: input, shape index: {}]
  %s1 = inlined_call_operand.vmem [shape: f32[16,128], index: 1, kind: output, shape index: {}]
  %s2 = sld [smem:[#allocation0]]
  $region45: #{reg_l1_loss.7} parent=0
    _
  %s4 = ssub.s32 1, %s2
  %s5 = scalar_select 0, %s4, %s2
  $region1: #{reg_l1_loss.7} parent=0
    #allocation2 [shape = 'u8[4194304]{0}', space=vmem, size = 0x400000, scoped, tag = 'input window, operand 0']
    #allocation3 [shape = 's32[2]{0}', space=sflag, size = 0x8, scoped, tag = 'scoped memory for reg_l1_loss.7']
    %6 = vsyncpa [#allocation3], 0
    %s7 = scalar_lea.sflag [#allocation3], 1
    %8 = vsyncpa %s7, 0
    loop: start=0, step=1, limit=4
    $region2: #{reg_l1_loss.7} parent=1 // loop_pre_header
      _
    $region3: #{reg_l1_loss.7} parent=1 // loop_header
      %s10 = sphi 0, %s14
      %p11 = scmp.ge.s32.totalorder %s10, 4
      %s17 = sphi 0, %s29
      %s18 = sphi 0, %s25
      %s19 = sphi 0, %s17
      %s20 = sphi 0, %s18
      %s21 = sphi 0, %s19
      %s22 = sphi 0, %s20
      %s34 = sphi 0, %s36
      %s37 = sphi 0, %s34
      %s38 = sphi 0, %s37
      %s54 = sphi 0, %s38
      %s60 = sphi 0, %s62
      %s63 = sphi 0, %s60
      %s64 = sphi 0, %s63
      %s80 = sphi 0, %s64
    $region4: #{reg_l1_loss.7} parent=1 // loop_header_branch
      %13 = sbr.rel (%p11) target = $region8
    $region5: #{reg_l1_loss.7} parent=1 // loop_body
      %s15 = ssub.s32 %s10, 1
      %s16 = ssub.s32 %s10, 2
      %s23 = sadd.s32 1, %s18
      %p24 = scmp.ge.s32.totalorder %s23, 1
      %s25 = scalar_select %p24, 0, %s23
      %s26 = sadd.s32 1, %s17
      %s27 = scalar_select %p24, %s26, %s17
      %p28 = scmp.ge.s32.totalorder %s27, 2
      %s29 = scalar_select %p28, 0, %s27
      %s30 = sadd.s32 %s17, %s18
      %s31 = sadd.s32 %s29, %s25
      %s32 = ssub.s32 %s30, %s31
      %p33 = scmp.eq.s32.totalorder %s32, 0
      %s35 = sadd.s32 %s34, 1
      %s36 = scalar_select %p33, %s34, %s35
      %p39 = pneg %p33
      %p40 = scmp.eq.s32.totalorder %s10, 1
      %p41 = por %p39, %p40
      %p42 = scmp.ne.s32.totalorder %s34, %s37
      %p43 = scmp.eq.s32.totalorder %s10, 0
      %p44 = por %p42, %p43
      %p45 = scmp.ne.s32.totalorder %s34, %s37
      %p46 = scmp.eq.s32.totalorder %s15, 1
      %p47 = por %p45, %p46
      %p48 = scmp.ne.s32.totalorder %s37, %s38
      %p49 = scmp.eq.s32.totalorder %s15, 0
      %p50 = por %p48, %p49
      %p51 = scmp.ne.s32.totalorder %s37, %s38
      %p52 = scmp.eq.s32.totalorder %s16, 1
      %p53 = por %p51, %p52
      %p55 = scmp.ne.s32.totalorder %s38, %s54
      %p56 = scmp.eq.s32.totalorder %s16, 0
      %p57 = por %p55, %p56
      %s58 = ssub.s32 %s17, %s29
      %p59 = scmp.eq.s32.totalorder %s58, 0
      %s61 = sadd.s32 %s60, 1
      %s62 = scalar_select %p59, %s60, %s61
      %p65 = pneg %p59
      %p66 = scmp.eq.s32.totalorder %s10, 1
      %p67 = por %p65, %p66
      %p68 = scmp.ne.s32.totalorder %s60, %s63
      %p69 = scmp.eq.s32.totalorder %s10, 0
      %p70 = por %p68, %p69
      %p71 = scmp.ne.s32.totalorder %s60, %s63
      %p72 = scmp.eq.s32.totalorder %s15, 1
      %p73 = por %p71, %p72
      %p74 = scmp.ne.s32.totalorder %s63, %s64
      %p75 = scmp.eq.s32.totalorder %s15, 0
      %p76 = por %p74, %p75
      %p77 = scmp.ne.s32.totalorder %s63, %s64
      %p78 = scmp.eq.s32.totalorder %s16, 1
      %p79 = por %p77, %p78
      %p81 = scmp.ne.s32.totalorder %s64, %s80
      %p82 = scmp.eq.s32.totalorder %s16, 0
      %p83 = por %p81, %p82
      %p84 = scmp.le.s32.totalorder 1, %s10
      %p85 = scmp.lt.s32.totalorder %s10, 3
      %p86 = pnand %p84, %p85
      %p87 = pneg %p86
      // Predicated region
      $region9: #{reg_l1_loss.7} parent=5 // pred_check
        _
      $region10: #{reg_l1_loss.7} parent=5 // pred_check_branch
        %89 = sbr.rel (%p86) target = $region12
      $region11: #{reg_l1_loss.7} parent=5 // pred_region
        %s90 = ssub.s32 %s10, 1
      $region12: #{reg_l1_loss.7} parent=5 // pred_fallthru
        _
      %p91 = scmp.lt.s32.totalorder %s10, 2
      // Predicated region
      $region13: #{reg_l1_loss.7} parent=5 // pred_check
        %p92 = pneg %p91
      $region14: #{reg_l1_loss.7} parent=5 // pred_check_branch
        %94 = sbr.rel (%p92) target = $region16
      $region15: #{reg_l1_loss.7} parent=5 // pred_region
        // Predicated region
        $region17: #{reg_l1_loss.7} parent=15 // pred_check
          %p95 = pneg %p44
        $region18: #{reg_l1_loss.7} parent=15 // pred_check_branch
          %97 = sbr.rel (%p95) target = $region20
        $region19: #{reg_l1_loss.7} parent=15 // pred_region
          %s98 = sand.u32 %s34, 1
          %s99 = scalar_lea.sflag [#allocation3], %s98
          %s100 = sand.u32 %s34, 1
          %s101 = smul.addr %s100, 4096
          %s102 = scalar_lea.vmem [#allocation2], %s101
          %s103 = sadd.s32 %s17, %s18
          %s104 = smul.u32 64, %s103
          %s106 = ssub.s32 65536, 65536
          %107 = vsyncadd %s99, %s106
          %s108 = smul.addr %s104, 8
          %s109 = smul.addr %s108, 128
          %s110 = scalar_lea.hbm %s0, %s109
          %s111 = sshll.u32 %s102, 4
          %s112 = int_to_ptr.vmem [resolvable:$true] %s111
          %117 = dma.hbm_to_vmem [thread:$0]  %s110, 65536, %s112, %s99, 1024, 1024, 64
        $region20: #{reg_l1_loss.7} parent=15 // pred_fallthru
          _
      $region16: #{reg_l1_loss.7} parent=5 // pred_fallthru
        _
      %p118 = scmp.le.s32.totalorder 1, %s10
      %p119 = scmp.lt.s32.totalorder %s10, 3
      %p120 = pnand %p118, %p119
      %p121 = pneg %p120
      // Predicated region
      $region21: #{reg_l1_loss.7} parent=5 // pred_check
        _
      $region22: #{reg_l1_loss.7} parent=5 // pred_check_branch
        %123 = sbr.rel (%p120) target = $region24
      $region23: #{reg_l1_loss.7} parent=5 // pred_region
        %s124 = ssub.s32 %s10, 1
        %s125 = sand.u32 %s37, 1
        %s126 = scalar_lea.sflag [#allocation3], %s125
        %s127 = sand.u32 %s37, 1
        %s128 = smul.addr %s127, 4096
        %s129 = scalar_lea.vmem [#allocation2], %s128
        // Predicated region
        $region25: #{reg_l1_loss.7} parent=23 // pred_check
          %p130 = pneg %p50
        $region26: #{reg_l1_loss.7} parent=23 // pred_check_branch
          %132 = sbr.rel (%p130) target = $region28
        $region27: #{reg_l1_loss.7} parent=23 // pred_region
          %133 = dma.done %s126, 65536
        $region28: #{reg_l1_loss.7} parent=23 // pred_fallthru
          _
        %s134 = sand.u32 %s37, 1
        %s135 = scalar_lea.sflag [#allocation3], %s134
        %s136 = sand.u32 %s37, 1
        %s137 = smul.addr %s136, 4096
        %s138 = scalar_lea.vmem [#allocation2], %s137
        %p139 = pneg %p50
        %p140 = pneg %p47
        %p141 = pneg %p76
        %p142 = pneg %p73
        %p143 = scmp.lt.s32.totalorder %s19, 1
        %s144 = scalar_select %p143, %s19, 1
        %s145 = smul.addr %s144, 8
        %s146 = scalar_lea.vmem %s1, %s145
        %s147 = sadd.s32 %s19, %s20
        %s148 = smul.u32 64, %s147
        %p149 = scmp.lt.s32.totalorder %s19, 1
        %s150 = scalar_select %p149, %s19, 1
        %s151 = smul.addr %s150, 8
        %s152 = scalar_lea.vmem %s1, %s151
        %p153 = scmp.eq.s32.totalorder %s20, 0
        // Predicated region
        $region29: #{reg_l1_loss.7} parent=23 // pred_check
          %p154 = pneg %p153
        $region30: #{reg_l1_loss.7} parent=23 // pred_check_branch
          %156 = sbr.rel (%p154) target = $region32
        $region31: #{reg_l1_loss.7} parent=23 // pred_region
          %157 = vst [vmem:[%s152] sm:$0xff] 0.0
        $region32: #{reg_l1_loss.7} parent=23 // pred_fallthru
          _
        %v158 = vld [vmem:[%s129] sm:$0xff]
        %v159 = vld [vmem:[%s129 + $0x8] sm:$0xff]
        %v160 = vld [vmem:[%s129 + $0x10] sm:$0xff]
        %v161 = vld [vmem:[%s129 + $0x18] sm:$0xff]
        %v162 = vld [vmem:[%s129 + $0x20] sm:$0xff]
        %v163 = vld [vmem:[%s129 + $0x28] sm:$0xff]
        %v164 = vld [vmem:[%s129 + $0x30] sm:$0xff]
        %v165 = vld [vmem:[%s129 + $0x38] sm:$0xff]
        %v166 = vld [vmem:[%s129 + $0x40] sm:$0xff]
        %v167 = vld [vmem:[%s129 + $0x48] sm:$0xff]
        %v168 = vld [vmem:[%s129 + $0x50] sm:$0xff]
        %v169 = vld [vmem:[%s129 + $0x58] sm:$0xff]
        %v170 = vld [vmem:[%s129 + $0x60] sm:$0xff]
        %v171 = vld [vmem:[%s129 + $0x68] sm:$0xff]
        %v172 = vld [vmem:[%s129 + $0x70] sm:$0xff]
        %v173 = vld [vmem:[%s129 + $0x78] sm:$0xff]
        %v174 = vld [vmem:[%s129 + $0x80] sm:$0xff]
        %v175 = vld [vmem:[%s129 + $0x88] sm:$0xff]
        %v176 = vld [vmem:[%s129 + $0x90] sm:$0xff]
        %v177 = vld [vmem:[%s129 + $0x98] sm:$0xff]
        %v178 = vld [vmem:[%s129 + $0xa0] sm:$0xff]
        %v179 = vld [vmem:[%s129 + $0xa8] sm:$0xff]
        %v180 = vld [vmem:[%s129 + $0xb0] sm:$0xff]
        %v181 = vld [vmem:[%s129 + $0xb8] sm:$0xff]
        %v182 = vld [vmem:[%s129 + $0xc0] sm:$0xff]
        %v183 = vld [vmem:[%s129 + $0xc8] sm:$0xff]
        %v184 = vld [vmem:[%s129 + $0xd0] sm:$0xff]
        %v185 = vld [vmem:[%s129 + $0xd8] sm:$0xff]
        %v186 = vld [vmem:[%s129 + $0xe0] sm:$0xff]
        %v187 = vld [vmem:[%s129 + $0xe8] sm:$0xff]
        %v188 = vld [vmem:[%s129 + $0xf0] sm:$0xff]
        %v189 = vld [vmem:[%s129 + $0xf8] sm:$0xff]
        %v190 = vld [vmem:[%s129 + $0x100] sm:$0xff]
        %v191 = vld [vmem:[%s129 + $0x108] sm:$0xff]
        %v192 = vld [vmem:[%s129 + $0x110] sm:$0xff]
        %v193 = vld [vmem:[%s129 + $0x118] sm:$0xff]
        %v194 = vld [vmem:[%s129 + $0x120] sm:$0xff]
        %v195 = vld [vmem:[%s129 + $0x128] sm:$0xff]
        %v196 = vld [vmem:[%s129 + $0x130] sm:$0xff]
        %v197 = vld [vmem:[%s129 + $0x138] sm:$0xff]
        %v198 = vld [vmem:[%s129 + $0x140] sm:$0xff]
        %v199 = vld [vmem:[%s129 + $0x148] sm:$0xff]
        %v200 = vld [vmem:[%s129 + $0x150] sm:$0xff]
        %v201 = vld [vmem:[%s129 + $0x158] sm:$0xff]
        %v202 = vld [vmem:[%s129 + $0x160] sm:$0xff]
        %v203 = vld [vmem:[%s129 + $0x168] sm:$0xff]
        %v204 = vld [vmem:[%s129 + $0x170] sm:$0xff]
        %v205 = vld [vmem:[%s129 + $0x178] sm:$0xff]
        %v206 = vld [vmem:[%s129 + $0x180] sm:$0xff]
        %v207 = vld [vmem:[%s129 + $0x188] sm:$0xff]
        %v208 = vld [vmem:[%s129 + $0x190] sm:$0xff]
        %v209 = vld [vmem:[%s129 + $0x198] sm:$0xff]
        %v210 = vld [vmem:[%s129 + $0x1a0] sm:$0xff]
        %v211 = vld [vmem:[%s129 + $0x1a8] sm:$0xff]
        %v212 = vld [vmem:[%s129 + $0x1b0] sm:$0xff]
        %v213 = vld [vmem:[%s129 + $0x1b8] sm:$0xff]
        %v214 = vld [vmem:[%s129 + $0x1c0] sm:$0xff]
        %v215 = vld [vmem:[%s129 + $0x1c8] sm:$0xff]
        %v216 = vld [vmem:[%s129 + $0x1d0] sm:$0xff]
        %v217 = vld [vmem:[%s129 + $0x1d8] sm:$0xff]
        %v218 = vld [vmem:[%s129 + $0x1e0] sm:$0xff]
        %v219 = vld [vmem:[%s129 + $0x1e8] sm:$0xff]
        %v220 = vld [vmem:[%s129 + $0x1f0] sm:$0xff]
        %v221 = vld [vmem:[%s129 + $0x1f8] sm:$0xff]
        %v222 = vld [vmem:[%s129 + $0x200] sm:$0xff]
        %v223 = vld [vmem:[%s129 + $0x208] sm:$0xff]
        %v224 = vld [vmem:[%s129 + $0x210] sm:$0xff]
        %v225 = vld [vmem:[%s129 + $0x218] sm:$0xff]
        %v226 = vld [vmem:[%s129 + $0x220] sm:$0xff]
        %v227 = vld [vmem:[%s129 + $0x228] sm:$0xff]
        %v228 = vld [vmem:[%s129 + $0x230] sm:$0xff]
        %v229 = vld [vmem:[%s129 + $0x238] sm:$0xff]
        %v230 = vld [vmem:[%s129 + $0x240] sm:$0xff]
        %v231 = vld [vmem:[%s129 + $0x248] sm:$0xff]
        %v232 = vld [vmem:[%s129 + $0x250] sm:$0xff]
        %v233 = vld [vmem:[%s129 + $0x258] sm:$0xff]
        %v234 = vld [vmem:[%s129 + $0x260] sm:$0xff]
        %v235 = vld [vmem:[%s129 + $0x268] sm:$0xff]
        %v236 = vld [vmem:[%s129 + $0x270] sm:$0xff]
        %v237 = vld [vmem:[%s129 + $0x278] sm:$0xff]
        %v238 = vld [vmem:[%s129 + $0x280] sm:$0xff]
        %v239 = vld [vmem:[%s129 + $0x288] sm:$0xff]
        %v240 = vld [vmem:[%s129 + $0x290] sm:$0xff]
        %v241 = vld [vmem:[%s129 + $0x298] sm:$0xff]
        %v242 = vld [vmem:[%s129 + $0x2a0] sm:$0xff]
        %v243 = vld [vmem:[%s129 + $0x2a8] sm:$0xff]
        %v244 = vld [vmem:[%s129 + $0x2b0] sm:$0xff]
        %v245 = vld [vmem:[%s129 + $0x2b8] sm:$0xff]
        %v246 = vld [vmem:[%s129 + $0x2c0] sm:$0xff]
        %v247 = vld [vmem:[%s129 + $0x2c8] sm:$0xff]
        %v248 = vld [vmem:[%s129 + $0x2d0] sm:$0xff]
        %v249 = vld [vmem:[%s129 + $0x2d8] sm:$0xff]
        %v250 = vld [vmem:[%s129 + $0x2e0] sm:$0xff]
        %v251 = vld [vmem:[%s129 + $0x2e8] sm:$0xff]
        %v252 = vld [vmem:[%s129 + $0x2f0] sm:$0xff]
        %v253 = vld [vmem:[%s129 + $0x2f8] sm:$0xff]
        %v254 = vld [vmem:[%s129 + $0x300] sm:$0xff]
        %v255 = vld [vmem:[%s129 + $0x308] sm:$0xff]
        %v256 = vld [vmem:[%s129 + $0x310] sm:$0xff]
        %v257 = vld [vmem:[%s129 + $0x318] sm:$0xff]
        %v258 = vld [vmem:[%s129 + $0x320] sm:$0xff]
        %v259 = vld [vmem:[%s129 + $0x328] sm:$0xff]
        %v260 = vld [vmem:[%s129 + $0x330] sm:$0xff]
        %v261 = vld [vmem:[%s129 + $0x338] sm:$0xff]
        %v262 = vld [vmem:[%s129 + $0x340] sm:$0xff]
        %v263 = vld [vmem:[%s129 + $0x348] sm:$0xff]
        %v264 = vld [vmem:[%s129 + $0x350] sm:$0xff]
        %v265 = vld [vmem:[%s129 + $0x358] sm:$0xff]
        %v266 = vld [vmem:[%s129 + $0x360] sm:$0xff]
        %v267 = vld [vmem:[%s129 + $0x368] sm:$0xff]
        %v268 = vld [vmem:[%s129 + $0x370] sm:$0xff]
        %v269 = vld [vmem:[%s129 + $0x378] sm:$0xff]
        %v270 = vld [vmem:[%s129 + $0x380] sm:$0xff]
        %v271 = vld [vmem:[%s129 + $0x388] sm:$0xff]
        %v272 = vld [vmem:[%s129 + $0x390] sm:$0xff]
        %v273 = vld [vmem:[%s129 + $0x398] sm:$0xff]
        %v274 = vld [vmem:[%s129 + $0x3a0] sm:$0xff]
        %v275 = vld [vmem:[%s129 + $0x3a8] sm:$0xff]
        %v276 = vld [vmem:[%s129 + $0x3b0] sm:$0xff]
        %v277 = vld [vmem:[%s129 + $0x3b8] sm:$0xff]
        %v278 = vld [vmem:[%s129 + $0x3c0] sm:$0xff]
        %v279 = vld [vmem:[%s129 + $0x3c8] sm:$0xff]
        %v280 = vld [vmem:[%s129 + $0x3d0] sm:$0xff]
        %v281 = vld [vmem:[%s129 + $0x3d8] sm:$0xff]
        %v282 = vld [vmem:[%s129 + $0x3e0] sm:$0xff]
        %v283 = vld [vmem:[%s129 + $0x3e8] sm:$0xff]
        %v284 = vld [vmem:[%s129 + $0x3f0] sm:$0xff]
        %v285 = vld [vmem:[%s129 + $0x3f8] sm:$0xff]
        %v286 = vld [vmem:[%s129 + $0x400] sm:$0xff]
        %v287 = vld [vmem:[%s129 + $0x408] sm:$0xff]
        %v288 = vld [vmem:[%s129 + $0x410] sm:$0xff]
        %v289 = vld [vmem:[%s129 + $0x418] sm:$0xff]
        %v290 = vld [vmem:[%s129 + $0x420] sm:$0xff]
        %v291 = vld [vmem:[%s129 + $0x428] sm:$0xff]
        %v292 = vld [vmem:[%s129 + $0x430] sm:$0xff]
        %v293 = vld [vmem:[%s129 + $0x438] sm:$0xff]
        %v294 = vld [vmem:[%s129 + $0x440] sm:$0xff]
        %v295 = vld [vmem:[%s129 + $0x448] sm:$0xff]
        %v296 = vld [vmem:[%s129 + $0x450] sm:$0xff]
        %v297 = vld [vmem:[%s129 + $0x458] sm:$0xff]
        %v298 = vld [vmem:[%s129 + $0x460] sm:$0xff]
        %v299 = vld [vmem:[%s129 + $0x468] sm:$0xff]
        %v300 = vld [vmem:[%s129 + $0x470] sm:$0xff]
        %v301 = vld [vmem:[%s129 + $0x478] sm:$0xff]
        %v302 = vld [vmem:[%s129 + $0x480] sm:$0xff]
        %v303 = vld [vmem:[%s129 + $0x488] sm:$0xff]
        %v304 = vld [vmem:[%s129 + $0x490] sm:$0xff]
        %v305 = vld [vmem:[%s129 + $0x498] sm:$0xff]
        %v306 = vld [vmem:[%s129 + $0x4a0] sm:$0xff]
        %v307 = vld [vmem:[%s129 + $0x4a8] sm:$0xff]
        %v308 = vld [vmem:[%s129 + $0x4b0] sm:$0xff]
        %v309 = vld [vmem:[%s129 + $0x4b8] sm:$0xff]
        %v310 = vld [vmem:[%s129 + $0x4c0] sm:$0xff]
        %v311 = vld [vmem:[%s129 + $0x4c8] sm:$0xff]
        %v312 = vld [vmem:[%s129 + $0x4d0] sm:$0xff]
        %v313 = vld [vmem:[%s129 + $0x4d8] sm:$0xff]
        %v314 = vld [vmem:[%s129 + $0x4e0] sm:$0xff]
        %v315 = vld [vmem:[%s129 + $0x4e8] sm:$0xff]
        %v316 = vld [vmem:[%s129 + $0x4f0] sm:$0xff]
        %v317 = vld [vmem:[%s129 + $0x4f8] sm:$0xff]
        %v318 = vld [vmem:[%s129 + $0x500] sm:$0xff]
        %v319 = vld [vmem:[%s129 + $0x508] sm:$0xff]
        %v320 = vld [vmem:[%s129 + $0x510] sm:$0xff]
        %v321 = vld [vmem:[%s129 + $0x518] sm:$0xff]
        %v322 = vld [vmem:[%s129 + $0x520] sm:$0xff]
        %v323 = vld [vmem:[%s129 + $0x528] sm:$0xff]
        %v324 = vld [vmem:[%s129 + $0x530] sm:$0xff]
        %v325 = vld [vmem:[%s129 + $0x538] sm:$0xff]
        %v326 = vld [vmem:[%s129 + $0x540] sm:$0xff]
        %v327 = vld [vmem:[%s129 + $0x548] sm:$0xff]
        %v328 = vld [vmem:[%s129 + $0x550] sm:$0xff]
        %v329 = vld [vmem:[%s129 + $0x558] sm:$0xff]
        %v330 = vld [vmem:[%s129 + $0x560] sm:$0xff]
        %v331 = vld [vmem:[%s129 + $0x568] sm:$0xff]
        %v332 = vld [vmem:[%s129 + $0x570] sm:$0xff]
        %v333 = vld [vmem:[%s129 + $0x578] sm:$0xff]
        %v334 = vld [vmem:[%s129 + $0x580] sm:$0xff]
        %v335 = vld [vmem:[%s129 + $0x588] sm:$0xff]
        %v336 = vld [vmem:[%s129 + $0x590] sm:$0xff]
        %v337 = vld [vmem:[%s129 + $0x598] sm:$0xff]
        %v338 = vld [vmem:[%s129 + $0x5a0] sm:$0xff]
        %v339 = vld [vmem:[%s129 + $0x5a8] sm:$0xff]
        %v340 = vld [vmem:[%s129 + $0x5b0] sm:$0xff]
        %v341 = vld [vmem:[%s129 + $0x5b8] sm:$0xff]
        %v342 = vld [vmem:[%s129 + $0x5c0] sm:$0xff]
        %v343 = vld [vmem:[%s129 + $0x5c8] sm:$0xff]
        %v344 = vld [vmem:[%s129 + $0x5d0] sm:$0xff]
        %v345 = vld [vmem:[%s129 + $0x5d8] sm:$0xff]
        %v346 = vld [vmem:[%s129 + $0x5e0] sm:$0xff]
        %v347 = vld [vmem:[%s129 + $0x5e8] sm:$0xff]
        %v348 = vld [vmem:[%s129 + $0x5f0] sm:$0xff]
        %v349 = vld [vmem:[%s129 + $0x5f8] sm:$0xff]
        %v350 = vld [vmem:[%s129 + $0x600] sm:$0xff]
        %v351 = vld [vmem:[%s129 + $0x608] sm:$0xff]
        %v352 = vld [vmem:[%s129 + $0x610] sm:$0xff]
        %v353 = vld [vmem:[%s129 + $0x618] sm:$0xff]
        %v354 = vld [vmem:[%s129 + $0x620] sm:$0xff]
        %v355 = vld [vmem:[%s129 + $0x628] sm:$0xff]
        %v356 = vld [vmem:[%s129 + $0x630] sm:$0xff]
        %v357 = vld [vmem:[%s129 + $0x638] sm:$0xff]
        %v358 = vld [vmem:[%s129 + $0x640] sm:$0xff]
        %v359 = vld [vmem:[%s129 + $0x648] sm:$0xff]
        %v360 = vld [vmem:[%s129 + $0x650] sm:$0xff]
        %v361 = vld [vmem:[%s129 + $0x658] sm:$0xff]
        %v362 = vld [vmem:[%s129 + $0x660] sm:$0xff]
        %v363 = vld [vmem:[%s129 + $0x668] sm:$0xff]
        %v364 = vld [vmem:[%s129 + $0x670] sm:$0xff]
        %v365 = vld [vmem:[%s129 + $0x678] sm:$0xff]
        %v366 = vld [vmem:[%s129 + $0x680] sm:$0xff]
        %v367 = vld [vmem:[%s129 + $0x688] sm:$0xff]
        %v368 = vld [vmem:[%s129 + $0x690] sm:$0xff]
        %v369 = vld [vmem:[%s129 + $0x698] sm:$0xff]
        %v370 = vld [vmem:[%s129 + $0x6a0] sm:$0xff]
        %v371 = vld [vmem:[%s129 + $0x6a8] sm:$0xff]
        %v372 = vld [vmem:[%s129 + $0x6b0] sm:$0xff]
        %v373 = vld [vmem:[%s129 + $0x6b8] sm:$0xff]
        %v374 = vld [vmem:[%s129 + $0x6c0] sm:$0xff]
        %v375 = vld [vmem:[%s129 + $0x6c8] sm:$0xff]
        %v376 = vld [vmem:[%s129 + $0x6d0] sm:$0xff]
        %v377 = vld [vmem:[%s129 + $0x6d8] sm:$0xff]
        %v378 = vld [vmem:[%s129 + $0x6e0] sm:$0xff]
        %v379 = vld [vmem:[%s129 + $0x6e8] sm:$0xff]
        %v380 = vld [vmem:[%s129 + $0x6f0] sm:$0xff]
        %v381 = vld [vmem:[%s129 + $0x6f8] sm:$0xff]
        %v382 = vld [vmem:[%s129 + $0x700] sm:$0xff]
        %v383 = vld [vmem:[%s129 + $0x708] sm:$0xff]
        %v384 = vld [vmem:[%s129 + $0x710] sm:$0xff]
        %v385 = vld [vmem:[%s129 + $0x718] sm:$0xff]
        %v386 = vld [vmem:[%s129 + $0x720] sm:$0xff]
        %v387 = vld [vmem:[%s129 + $0x728] sm:$0xff]
        %v388 = vld [vmem:[%s129 + $0x730] sm:$0xff]
        %v389 = vld [vmem:[%s129 + $0x738] sm:$0xff]
        %v390 = vld [vmem:[%s129 + $0x740] sm:$0xff]
        %v391 = vld [vmem:[%s129 + $0x748] sm:$0xff]
        %v392 = vld [vmem:[%s129 + $0x750] sm:$0xff]
        %v393 = vld [vmem:[%s129 + $0x758] sm:$0xff]
        %v394 = vld [vmem:[%s129 + $0x760] sm:$0xff]
        %v395 = vld [vmem:[%s129 + $0x768] sm:$0xff]
        %v396 = vld [vmem:[%s129 + $0x770] sm:$0xff]
        %v397 = vld [vmem:[%s129 + $0x778] sm:$0xff]
        %v398 = vld [vmem:[%s129 + $0x780] sm:$0xff]
        %v399 = vld [vmem:[%s129 + $0x788] sm:$0xff]
        %v400 = vld [vmem:[%s129 + $0x790] sm:$0xff]
        %v401 = vld [vmem:[%s129 + $0x798] sm:$0xff]
        %v402 = vld [vmem:[%s129 + $0x7a0] sm:$0xff]
        %v403 = vld [vmem:[%s129 + $0x7a8] sm:$0xff]
        %v404 = vld [vmem:[%s129 + $0x7b0] sm:$0xff]
        %v405 = vld [vmem:[%s129 + $0x7b8] sm:$0xff]
        %v406 = vld [vmem:[%s129 + $0x7c0] sm:$0xff]
        %v407 = vld [vmem:[%s129 + $0x7c8] sm:$0xff]
        %v408 = vld [vmem:[%s129 + $0x7d0] sm:$0xff]
        %v409 = vld [vmem:[%s129 + $0x7d8] sm:$0xff]
        %v410 = vld [vmem:[%s129 + $0x7e0] sm:$0xff]
        %v411 = vld [vmem:[%s129 + $0x7e8] sm:$0xff]
        %v412 = vld [vmem:[%s129 + $0x7f0] sm:$0xff]
        %v413 = vld [vmem:[%s129 + $0x7f8] sm:$0xff]
        %v414 = vld [vmem:[%s129 + $0x800] sm:$0xff]
        %v415 = vld [vmem:[%s129 + $0x808] sm:$0xff]
        %v416 = vld [vmem:[%s129 + $0x810] sm:$0xff]
        %v417 = vld [vmem:[%s129 + $0x818] sm:$0xff]
        %v418 = vld [vmem:[%s129 + $0x820] sm:$0xff]
        %v419 = vld [vmem:[%s129 + $0x828] sm:$0xff]
        %v420 = vld [vmem:[%s129 + $0x830] sm:$0xff]
        %v421 = vld [vmem:[%s129 + $0x838] sm:$0xff]
        %v422 = vld [vmem:[%s129 + $0x840] sm:$0xff]
        %v423 = vld [vmem:[%s129 + $0x848] sm:$0xff]
        %v424 = vld [vmem:[%s129 + $0x850] sm:$0xff]
        %v425 = vld [vmem:[%s129 + $0x858] sm:$0xff]
        %v426 = vld [vmem:[%s129 + $0x860] sm:$0xff]
        %v427 = vld [vmem:[%s129 + $0x868] sm:$0xff]
        %v428 = vld [vmem:[%s129 + $0x870] sm:$0xff]
        %v429 = vld [vmem:[%s129 + $0x878] sm:$0xff]
        %v430 = vld [vmem:[%s129 + $0x880] sm:$0xff]
        %v431 = vld [vmem:[%s129 + $0x888] sm:$0xff]
        %v432 = vld [vmem:[%s129 + $0x890] sm:$0xff]
        %v433 = vld [vmem:[%s129 + $0x898] sm:$0xff]
        %v434 = vld [vmem:[%s129 + $0x8a0] sm:$0xff]
        %v435 = vld [vmem:[%s129 + $0x8a8] sm:$0xff]
        %v436 = vld [vmem:[%s129 + $0x8b0] sm:$0xff]
        %v437 = vld [vmem:[%s129 + $0x8b8] sm:$0xff]
        %v438 = vld [vmem:[%s129 + $0x8c0] sm:$0xff]
        %v439 = vld [vmem:[%s129 + $0x8c8] sm:$0xff]
        %v440 = vld [vmem:[%s129 + $0x8d0] sm:$0xff]
        %v441 = vld [vmem:[%s129 + $0x8d8] sm:$0xff]
        %v442 = vld [vmem:[%s129 + $0x8e0] sm:$0xff]
        %v443 = vld [vmem:[%s129 + $0x8e8] sm:$0xff]
        %v444 = vld [vmem:[%s129 + $0x8f0] sm:$0xff]
        %v445 = vld [vmem:[%s129 + $0x8f8] sm:$0xff]
        %v446 = vld [vmem:[%s129 + $0x900] sm:$0xff]
        %v447 = vld [vmem:[%s129 + $0x908] sm:$0xff]
        %v448 = vld [vmem:[%s129 + $0x910] sm:$0xff]
        %v449 = vld [vmem:[%s129 + $0x918] sm:$0xff]
        %v450 = vld [vmem:[%s129 + $0x920] sm:$0xff]
        %v451 = vld [vmem:[%s129 + $0x928] sm:$0xff]
        %v452 = vld [vmem:[%s129 + $0x930] sm:$0xff]
        %v453 = vld [vmem:[%s129 + $0x938] sm:$0xff]
        %v454 = vld [vmem:[%s129 + $0x940] sm:$0xff]
        %v455 = vld [vmem:[%s129 + $0x948] sm:$0xff]
        %v456 = vld [vmem:[%s129 + $0x950] sm:$0xff]
        %v457 = vld [vmem:[%s129 + $0x958] sm:$0xff]
        %v458 = vld [vmem:[%s129 + $0x960] sm:$0xff]
        %v459 = vld [vmem:[%s129 + $0x968] sm:$0xff]
        %v460 = vld [vmem:[%s129 + $0x970] sm:$0xff]
        %v461 = vld [vmem:[%s129 + $0x978] sm:$0xff]
        %v462 = vld [vmem:[%s129 + $0x980] sm:$0xff]
        %v463 = vld [vmem:[%s129 + $0x988] sm:$0xff]
        %v464 = vld [vmem:[%s129 + $0x990] sm:$0xff]
        %v465 = vld [vmem:[%s129 + $0x998] sm:$0xff]
        %v466 = vld [vmem:[%s129 + $0x9a0] sm:$0xff]
        %v467 = vld [vmem:[%s129 + $0x9a8] sm:$0xff]
        %v468 = vld [vmem:[%s129 + $0x9b0] sm:$0xff]
        %v469 = vld [vmem:[%s129 + $0x9b8] sm:$0xff]
        %v470 = vld [vmem:[%s129 + $0x9c0] sm:$0xff]
        %v471 = vld [vmem:[%s129 + $0x9c8] sm:$0xff]
        %v472 = vld [vmem:[%s129 + $0x9d0] sm:$0xff]
        %v473 = vld [vmem:[%s129 + $0x9d8] sm:$0xff]
        %v474 = vld [vmem:[%s129 + $0x9e0] sm:$0xff]
        %v475 = vld [vmem:[%s129 + $0x9e8] sm:$0xff]
        %v476 = vld [vmem:[%s129 + $0x9f0] sm:$0xff]
        %v477 = vld [vmem:[%s129 + $0x9f8] sm:$0xff]
        %v478 = vld [vmem:[%s129 + $0xa00] sm:$0xff]
        %v479 = vld [vmem:[%s129 + $0xa08] sm:$0xff]
        %v480 = vld [vmem:[%s129 + $0xa10] sm:$0xff]
        %v481 = vld [vmem:[%s129 + $0xa18] sm:$0xff]
        %v482 = vld [vmem:[%s129 + $0xa20] sm:$0xff]
        %v483 = vld [vmem:[%s129 + $0xa28] sm:$0xff]
        %v484 = vld [vmem:[%s129 + $0xa30] sm:$0xff]
        %v485 = vld [vmem:[%s129 + $0xa38] sm:$0xff]
        %v486 = vld [vmem:[%s129 + $0xa40] sm:$0xff]
        %v487 = vld [vmem:[%s129 + $0xa48] sm:$0xff]
        %v488 = vld [vmem:[%s129 + $0xa50] sm:$0xff]
        %v489 = vld [vmem:[%s129 + $0xa58] sm:$0xff]
        %v490 = vld [vmem:[%s129 + $0xa60] sm:$0xff]
        %v491 = vld [vmem:[%s129 + $0xa68] sm:$0xff]
        %v492 = vld [vmem:[%s129 + $0xa70] sm:$0xff]
        %v493 = vld [vmem:[%s129 + $0xa78] sm:$0xff]
        %v494 = vld [vmem:[%s129 + $0xa80] sm:$0xff]
        %v495 = vld [vmem:[%s129 + $0xa88] sm:$0xff]
        %v496 = vld [vmem:[%s129 + $0xa90] sm:$0xff]
        %v497 = vld [vmem:[%s129 + $0xa98] sm:$0xff]
        %v498 = vld [vmem:[%s129 + $0xaa0] sm:$0xff]
        %v499 = vld [vmem:[%s129 + $0xaa8] sm:$0xff]
        %v500 = vld [vmem:[%s129 + $0xab0] sm:$0xff]
        %v501 = vld [vmem:[%s129 + $0xab8] sm:$0xff]
        %v502 = vld [vmem:[%s129 + $0xac0] sm:$0xff]
        %v503 = vld [vmem:[%s129 + $0xac8] sm:$0xff]
        %v504 = vld [vmem:[%s129 + $0xad0] sm:$0xff]
        %v505 = vld [vmem:[%s129 + $0xad8] sm:$0xff]
        %v506 = vld [vmem:[%s129 + $0xae0] sm:$0xff]
        %v507 = vld [vmem:[%s129 + $0xae8] sm:$0xff]
        %v508 = vld [vmem:[%s129 + $0xaf0] sm:$0xff]
        %v509 = vld [vmem:[%s129 + $0xaf8] sm:$0xff]
        %v510 = vld [vmem:[%s129 + $0xb00] sm:$0xff]
        %v511 = vld [vmem:[%s129 + $0xb08] sm:$0xff]
        %v512 = vld [vmem:[%s129 + $0xb10] sm:$0xff]
        %v513 = vld [vmem:[%s129 + $0xb18] sm:$0xff]
        %v514 = vld [vmem:[%s129 + $0xb20] sm:$0xff]
        %v515 = vld [vmem:[%s129 + $0xb28] sm:$0xff]
        %v516 = vld [vmem:[%s129 + $0xb30] sm:$0xff]
        %v517 = vld [vmem:[%s129 + $0xb38] sm:$0xff]
        %v518 = vld [vmem:[%s129 + $0xb40] sm:$0xff]
        %v519 = vld [vmem:[%s129 + $0xb48] sm:$0xff]
        %v520 = vld [vmem:[%s129 + $0xb50] sm:$0xff]
        %v521 = vld [vmem:[%s129 + $0xb58] sm:$0xff]
        %v522 = vld [vmem:[%s129 + $0xb60] sm:$0xff]
        %v523 = vld [vmem:[%s129 + $0xb68] sm:$0xff]
        %v524 = vld [vmem:[%s129 + $0xb70] sm:$0xff]
        %v525 = vld [vmem:[%s129 + $0xb78] sm:$0xff]
        %v526 = vld [vmem:[%s129 + $0xb80] sm:$0xff]
        %v527 = vld [vmem:[%s129 + $0xb88] sm:$0xff]
        %v528 = vld [vmem:[%s129 + $0xb90] sm:$0xff]
        %v529 = vld [vmem:[%s129 + $0xb98] sm:$0xff]
        %v530 = vld [vmem:[%s129 + $0xba0] sm:$0xff]
        %v531 = vld [vmem:[%s129 + $0xba8] sm:$0xff]
        %v532 = vld [vmem:[%s129 + $0xbb0] sm:$0xff]
        %v533 = vld [vmem:[%s129 + $0xbb8] sm:$0xff]
        %v534 = vld [vmem:[%s129 + $0xbc0] sm:$0xff]
        %v535 = vld [vmem:[%s129 + $0xbc8] sm:$0xff]
        %v536 = vld [vmem:[%s129 + $0xbd0] sm:$0xff]
        %v537 = vld [vmem:[%s129 + $0xbd8] sm:$0xff]
        %v538 = vld [vmem:[%s129 + $0xbe0] sm:$0xff]
        %v539 = vld [vmem:[%s129 + $0xbe8] sm:$0xff]
        %v540 = vld [vmem:[%s129 + $0xbf0] sm:$0xff]
        %v541 = vld [vmem:[%s129 + $0xbf8] sm:$0xff]
        %v542 = vld [vmem:[%s129 + $0xc00] sm:$0xff]
        %v543 = vld [vmem:[%s129 + $0xc08] sm:$0xff]
        %v544 = vld [vmem:[%s129 + $0xc10] sm:$0xff]
        %v545 = vld [vmem:[%s129 + $0xc18] sm:$0xff]
        %v546 = vld [vmem:[%s129 + $0xc20] sm:$0xff]
        %v547 = vld [vmem:[%s129 + $0xc28] sm:$0xff]
        %v548 = vld [vmem:[%s129 + $0xc30] sm:$0xff]
        %v549 = vld [vmem:[%s129 + $0xc38] sm:$0xff]
        %v550 = vld [vmem:[%s129 + $0xc40] sm:$0xff]
        %v551 = vld [vmem:[%s129 + $0xc48] sm:$0xff]
        %v552 = vld [vmem:[%s129 + $0xc50] sm:$0xff]
        %v553 = vld [vmem:[%s129 + $0xc58] sm:$0xff]
        %v554 = vld [vmem:[%s129 + $0xc60] sm:$0xff]
        %v555 = vld [vmem:[%s129 + $0xc68] sm:$0xff]
        %v556 = vld [vmem:[%s129 + $0xc70] sm:$0xff]
        %v557 = vld [vmem:[%s129 + $0xc78] sm:$0xff]
        %v558 = vld [vmem:[%s129 + $0xc80] sm:$0xff]
        %v559 = vld [vmem:[%s129 + $0xc88] sm:$0xff]
        %v560 = vld [vmem:[%s129 + $0xc90] sm:$0xff]
        %v561 = vld [vmem:[%s129 + $0xc98] sm:$0xff]
        %v562 = vld [vmem:[%s129 + $0xca0] sm:$0xff]
        %v563 = vld [vmem:[%s129 + $0xca8] sm:$0xff]
        %v564 = vld [vmem:[%s129 + $0xcb0] sm:$0xff]
        %v565 = vld [vmem:[%s129 + $0xcb8] sm:$0xff]
        %v566 = vld [vmem:[%s129 + $0xcc0] sm:$0xff]
        %v567 = vld [vmem:[%s129 + $0xcc8] sm:$0xff]
        %v568 = vld [vmem:[%s129 + $0xcd0] sm:$0xff]
        %v569 = vld [vmem:[%s129 + $0xcd8] sm:$0xff]
        %v570 = vld [vmem:[%s129 + $0xce0] sm:$0xff]
        %v571 = vld [vmem:[%s129 + $0xce8] sm:$0xff]
        %v572 = vld [vmem:[%s129 + $0xcf0] sm:$0xff]
        %v573 = vld [vmem:[%s129 + $0xcf8] sm:$0xff]
        %v574 = vld [vmem:[%s129 + $0xd00] sm:$0xff]
        %v575 = vld [vmem:[%s129 + $0xd08] sm:$0xff]
        %v576 = vld [vmem:[%s129 + $0xd10] sm:$0xff]
        %v577 = vld [vmem:[%s129 + $0xd18] sm:$0xff]
        %v578 = vld [vmem:[%s129 + $0xd20] sm:$0xff]
        %v579 = vld [vmem:[%s129 + $0xd28] sm:$0xff]
        %v580 = vld [vmem:[%s129 + $0xd30] sm:$0xff]
        %v581 = vld [vmem:[%s129 + $0xd38] sm:$0xff]
        %v582 = vld [vmem:[%s129 + $0xd40] sm:$0xff]
        %v583 = vld [vmem:[%s129 + $0xd48] sm:$0xff]
        %v584 = vld [vmem:[%s129 + $0xd50] sm:$0xff]
        %v585 = vld [vmem:[%s129 + $0xd58] sm:$0xff]
        %v586 = vld [vmem:[%s129 + $0xd60] sm:$0xff]
        %v587 = vld [vmem:[%s129 + $0xd68] sm:$0xff]
        %v588 = vld [vmem:[%s129 + $0xd70] sm:$0xff]
        %v589 = vld [vmem:[%s129 + $0xd78] sm:$0xff]
        %v590 = vld [vmem:[%s129 + $0xd80] sm:$0xff]
        %v591 = vld [vmem:[%s129 + $0xd88] sm:$0xff]
        %v592 = vld [vmem:[%s129 + $0xd90] sm:$0xff]
        %v593 = vld [vmem:[%s129 + $0xd98] sm:$0xff]
        %v594 = vld [vmem:[%s129 + $0xda0] sm:$0xff]
        %v595 = vld [vmem:[%s129 + $0xda8] sm:$0xff]
        %v596 = vld [vmem:[%s129 + $0xdb0] sm:$0xff]
        %v597 = vld [vmem:[%s129 + $0xdb8] sm:$0xff]
        %v598 = vld [vmem:[%s129 + $0xdc0] sm:$0xff]
        %v599 = vld [vmem:[%s129 + $0xdc8] sm:$0xff]
        %v600 = vld [vmem:[%s129 + $0xdd0] sm:$0xff]
        %v601 = vld [vmem:[%s129 + $0xdd8] sm:$0xff]
        %v602 = vld [vmem:[%s129 + $0xde0] sm:$0xff]
        %v603 = vld [vmem:[%s129 + $0xde8] sm:$0xff]
        %v604 = vld [vmem:[%s129 + $0xdf0] sm:$0xff]
        %v605 = vld [vmem:[%s129 + $0xdf8] sm:$0xff]
        %v606 = vld [vmem:[%s129 + $0xe00] sm:$0xff]
        %v607 = vld [vmem:[%s129 + $0xe08] sm:$0xff]
        %v608 = vld [vmem:[%s129 + $0xe10] sm:$0xff]
        %v609 = vld [vmem:[%s129 + $0xe18] sm:$0xff]
        %v610 = vld [vmem:[%s129 + $0xe20] sm:$0xff]
        %v611 = vld [vmem:[%s129 + $0xe28] sm:$0xff]
        %v612 = vld [vmem:[%s129 + $0xe30] sm:$0xff]
        %v613 = vld [vmem:[%s129 + $0xe38] sm:$0xff]
        %v614 = vld [vmem:[%s129 + $0xe40] sm:$0xff]
        %v615 = vld [vmem:[%s129 + $0xe48] sm:$0xff]
        %v616 = vld [vmem:[%s129 + $0xe50] sm:$0xff]
        %v617 = vld [vmem:[%s129 + $0xe58] sm:$0xff]
        %v618 = vld [vmem:[%s129 + $0xe60] sm:$0xff]
        %v619 = vld [vmem:[%s129 + $0xe68] sm:$0xff]
        %v620 = vld [vmem:[%s129 + $0xe70] sm:$0xff]
        %v621 = vld [vmem:[%s129 + $0xe78] sm:$0xff]
        %v622 = vld [vmem:[%s129 + $0xe80] sm:$0xff]
        %v623 = vld [vmem:[%s129 + $0xe88] sm:$0xff]
        %v624 = vld [vmem:[%s129 + $0xe90] sm:$0xff]
        %v625 = vld [vmem:[%s129 + $0xe98] sm:$0xff]
        %v626 = vld [vmem:[%s129 + $0xea0] sm:$0xff]
        %v627 = vld [vmem:[%s129 + $0xea8] sm:$0xff]
        %v628 = vld [vmem:[%s129 + $0xeb0] sm:$0xff]
        %v629 = vld [vmem:[%s129 + $0xeb8] sm:$0xff]
        %v630 = vld [vmem:[%s129 + $0xec0] sm:$0xff]
        %v631 = vld [vmem:[%s129 + $0xec8] sm:$0xff]
        %v632 = vld [vmem:[%s129 + $0xed0] sm:$0xff]
        %v633 = vld [vmem:[%s129 + $0xed8] sm:$0xff]
        %v634 = vld [vmem:[%s129 + $0xee0] sm:$0xff]
        %v635 = vld [vmem:[%s129 + $0xee8] sm:$0xff]
        %v636 = vld [vmem:[%s129 + $0xef0] sm:$0xff]
        %v637 = vld [vmem:[%s129 + $0xef8] sm:$0xff]
        %v638 = vld [vmem:[%s129 + $0xf00] sm:$0xff]
        %v639 = vld [vmem:[%s129 + $0xf08] sm:$0xff]
        %v640 = vld [vmem:[%s129 + $0xf10] sm:$0xff]
        %v641 = vld [vmem:[%s129 + $0xf18] sm:$0xff]
        %v642 = vld [vmem:[%s129 + $0xf20] sm:$0xff]
        %v643 = vld [vmem:[%s129 + $0xf28] sm:$0xff]
        %v644 = vld [vmem:[%s129 + $0xf30] sm:$0xff]
        %v645 = vld [vmem:[%s129 + $0xf38] sm:$0xff]
        %v646 = vld [vmem:[%s129 + $0xf40] sm:$0xff]
        %v647 = vld [vmem:[%s129 + $0xf48] sm:$0xff]
        %v648 = vld [vmem:[%s129 + $0xf50] sm:$0xff]
        %v649 = vld [vmem:[%s129 + $0xf58] sm:$0xff]
        %v650 = vld [vmem:[%s129 + $0xf60] sm:$0xff]
        %v651 = vld [vmem:[%s129 + $0xf68] sm:$0xff]
        %v652 = vld [vmem:[%s129 + $0xf70] sm:$0xff]
        %v653 = vld [vmem:[%s129 + $0xf78] sm:$0xff]
        %v654 = vld [vmem:[%s129 + $0xf80] sm:$0xff]
        %v655 = vld [vmem:[%s129 + $0xf88] sm:$0xff]
        %v656 = vld [vmem:[%s129 + $0xf90] sm:$0xff]
        %v657 = vld [vmem:[%s129 + $0xf98] sm:$0xff]
        %v658 = vld [vmem:[%s129 + $0xfa0] sm:$0xff]
        %v659 = vld [vmem:[%s129 + $0xfa8] sm:$0xff]
        %v660 = vld [vmem:[%s129 + $0xfb0] sm:$0xff]
        %v661 = vld [vmem:[%s129 + $0xfb8] sm:$0xff]
        %v662 = vld [vmem:[%s129 + $0xfc0] sm:$0xff]
        %v663 = vld [vmem:[%s129 + $0xfc8] sm:$0xff]
        %v664 = vld [vmem:[%s129 + $0xfd0] sm:$0xff]
        %v665 = vld [vmem:[%s129 + $0xfd8] sm:$0xff]
        %v666 = vld [vmem:[%s129 + $0xfe0] sm:$0xff]
        %v667 = vld [vmem:[%s129 + $0xfe8] sm:$0xff]
        %v668 = vld [vmem:[%s129 + $0xff0] sm:$0xff]
        %v669 = vld [vmem:[%s129 + $0xff8] sm:$0xff]
        %v670 = vand.u32 2147483647, %v158
        %v671 = vand.u32 2147483647, %v159
        %v672 = vand.u32 2147483647, %v160
        %v673 = vand.u32 2147483647, %v161
        %v674 = vand.u32 2147483647, %v162
        %v675 = vand.u32 2147483647, %v163
        %v676 = vand.u32 2147483647, %v164
        %v677 = vand.u32 2147483647, %v165
        %v678 = vand.u32 2147483647, %v166
        %v679 = vand.u32 2147483647, %v167
        %v680 = vand.u32 2147483647, %v168
        %v681 = vand.u32 2147483647, %v169
        %v682 = vand.u32 2147483647, %v170
        %v683 = vand.u32 2147483647, %v171
        %v684 = vand.u32 2147483647, %v172
        %v685 = vand.u32 2147483647, %v173
        %v686 = vand.u32 2147483647, %v174
        %v687 = vand.u32 2147483647, %v175
        %v688 = vand.u32 2147483647, %v176
        %v689 = vand.u32 2147483647, %v177
        %v690 = vand.u32 2147483647, %v178
        %v691 = vand.u32 2147483647, %v179
        %v692 = vand.u32 2147483647, %v180
        %v693 = vand.u32 2147483647, %v181
        %v694 = vand.u32 2147483647, %v182
        %v695 = vand.u32 2147483647, %v183
        %v696 = vand.u32 2147483647, %v184
        %v697 = vand.u32 2147483647, %v185
        %v698 = vand.u32 2147483647, %v186
        %v699 = vand.u32 2147483647, %v187
        %v700 = vand.u32 2147483647, %v188
        %v701 = vand.u32 2147483647, %v189
        %v702 = vand.u32 2147483647, %v190
        %v703 = vand.u32 2147483647, %v191
        %v704 = vand.u32 2147483647, %v192
        %v705 = vand.u32 2147483647, %v193
        %v706 = vand.u32 2147483647, %v194
        %v707 = vand.u32 2147483647, %v195
        %v708 = vand.u32 2147483647, %v196
        %v709 = vand.u32 2147483647, %v197
        %v710 = vand.u32 2147483647, %v198
        %v711 = vand.u32 2147483647, %v199
        %v712 = vand.u32 2147483647, %v200
        %v713 = vand.u32 2147483647, %v201
        %v714 = vand.u32 2147483647, %v202
        %v715 = vand.u32 2147483647, %v203
        %v716 = vand.u32 2147483647, %v204
        %v717 = vand.u32 2147483647, %v205
        %v718 = vand.u32 2147483647, %v206
        %v719 = vand.u32 2147483647, %v207
        %v720 = vand.u32 2147483647, %v208
        %v721 = vand.u32 2147483647, %v209
        %v722 = vand.u32 2147483647, %v210
        %v723 = vand.u32 2147483647, %v211
        %v724 = vand.u32 2147483647, %v212
        %v725 = vand.u32 2147483647, %v213
        %v726 = vand.u32 2147483647, %v214
        %v727 = vand.u32 2147483647, %v215
        %v728 = vand.u32 2147483647, %v216
        %v729 = vand.u32 2147483647, %v217
        %v730 = vand.u32 2147483647, %v218
        %v731 = vand.u32 2147483647, %v219
        %v732 = vand.u32 2147483647, %v220
        %v733 = vand.u32 2147483647, %v221
        %v734 = vand.u32 2147483647, %v222
        %v735 = vand.u32 2147483647, %v223
        %v736 = vand.u32 2147483647, %v224
        %v737 = vand.u32 2147483647, %v225
        %v738 = vand.u32 2147483647, %v226
        %v739 = vand.u32 2147483647, %v227
        %v740 = vand.u32 2147483647, %v228
        %v741 = vand.u32 2147483647, %v229
        %v742 = vand.u32 2147483647, %v230
        %v743 = vand.u32 2147483647, %v231
        %v744 = vand.u32 2147483647, %v232
        %v745 = vand.u32 2147483647, %v233
        %v746 = vand.u32 2147483647, %v234
        %v747 = vand.u32 2147483647, %v235
        %v748 = vand.u32 2147483647, %v236
        %v749 = vand.u32 2147483647, %v237
        %v750 = vand.u32 2147483647, %v238
        %v751 = vand.u32 2147483647, %v239
        %v752 = vand.u32 2147483647, %v240
        %v753 = vand.u32 2147483647, %v241
        %v754 = vand.u32 2147483647, %v242
        %v755 = vand.u32 2147483647, %v243
        %v756 = vand.u32 2147483647, %v244
        %v757 = vand.u32 2147483647, %v245
        %v758 = vand.u32 2147483647, %v246
        %v759 = vand.u32 2147483647, %v247
        %v760 = vand.u32 2147483647, %v248
        %v761 = vand.u32 2147483647, %v249
        %v762 = vand.u32 2147483647, %v250
        %v763 = vand.u32 2147483647, %v251
        %v764 = vand.u32 2147483647, %v252
        %v765 = vand.u32 2147483647, %v253
        %v766 = vand.u32 2147483647, %v254
        %v767 = vand.u32 2147483647, %v255
        %v768 = vand.u32 2147483647, %v256
        %v769 = vand.u32 2147483647, %v257
        %v770 = vand.u32 2147483647, %v258
        %v771 = vand.u32 2147483647, %v259
        %v772 = vand.u32 2147483647, %v260
        %v773 = vand.u32 2147483647, %v261
        %v774 = vand.u32 2147483647, %v262
        %v775 = vand.u32 2147483647, %v263
        %v776 = vand.u32 2147483647, %v264
        %v777 = vand.u32 2147483647, %v265
        %v778 = vand.u32 2147483647, %v266
        %v779 = vand.u32 2147483647, %v267
        %v780 = vand.u32 2147483647, %v268
        %v781 = vand.u32 2147483647, %v269
        %v782 = vand.u32 2147483647, %v270
        %v783 = vand.u32 2147483647, %v271
        %v784 = vand.u32 2147483647, %v272
        %v785 = vand.u32 2147483647, %v273
        %v786 = vand.u32 2147483647, %v274
        %v787 = vand.u32 2147483647, %v275
        %v788 = vand.u32 2147483647, %v276
        %v789 = vand.u32 2147483647, %v277
        %v790 = vand.u32 2147483647, %v278
        %v791 = vand.u32 2147483647, %v279
        %v792 = vand.u32 2147483647, %v280
        %v793 = vand.u32 2147483647, %v281
        %v794 = vand.u32 2147483647, %v282
        %v795 = vand.u32 2147483647, %v283
        %v796 = vand.u32 2147483647, %v284
        %v797 = vand.u32 2147483647, %v285
        %v798 = vand.u32 2147483647, %v286
        %v799 = vand.u32 2147483647, %v287
        %v800 = vand.u32 2147483647, %v288
        %v801 = vand.u32 2147483647, %v289
        %v802 = vand.u32 2147483647, %v290
        %v803 = vand.u32 2147483647, %v291
        %v804 = vand.u32 2147483647, %v292
        %v805 = vand.u32 2147483647, %v293
        %v806 = vand.u32 2147483647, %v294
        %v807 = vand.u32 2147483647, %v295
        %v808 = vand.u32 2147483647, %v296
        %v809 = vand.u32 2147483647, %v297
        %v810 = vand.u32 2147483647, %v298
        %v811 = vand.u32 2147483647, %v299
        %v812 = vand.u32 2147483647, %v300
        %v813 = vand.u32 2147483647, %v301
        %v814 = vand.u32 2147483647, %v302
        %v815 = vand.u32 2147483647, %v303
        %v816 = vand.u32 2147483647, %v304
        %v817 = vand.u32 2147483647, %v305
        %v818 = vand.u32 2147483647, %v306
        %v819 = vand.u32 2147483647, %v307
        %v820 = vand.u32 2147483647, %v308
        %v821 = vand.u32 2147483647, %v309
        %v822 = vand.u32 2147483647, %v310
        %v823 = vand.u32 2147483647, %v311
        %v824 = vand.u32 2147483647, %v312
        %v825 = vand.u32 2147483647, %v313
        %v826 = vand.u32 2147483647, %v314
        %v827 = vand.u32 2147483647, %v315
        %v828 = vand.u32 2147483647, %v316
        %v829 = vand.u32 2147483647, %v317
        %v830 = vand.u32 2147483647, %v318
        %v831 = vand.u32 2147483647, %v319
        %v832 = vand.u32 2147483647, %v320
        %v833 = vand.u32 2147483647, %v321
        %v834 = vand.u32 2147483647, %v322
        %v835 = vand.u32 2147483647, %v323
        %v836 = vand.u32 2147483647, %v324
        %v837 = vand.u32 2147483647, %v325
        %v838 = vand.u32 2147483647, %v326
        %v839 = vand.u32 2147483647, %v327
        %v840 = vand.u32 2147483647, %v328
        %v841 = vand.u32 2147483647, %v329
        %v842 = vand.u32 2147483647, %v330
        %v843 = vand.u32 2147483647, %v331
        %v844 = vand.u32 2147483647, %v332
        %v845 = vand.u32 2147483647, %v333
        %v846 = vand.u32 2147483647, %v334
        %v847 = vand.u32 2147483647, %v335
        %v848 = vand.u32 2147483647, %v336
        %v849 = vand.u32 2147483647, %v337
        %v850 = vand.u32 2147483647, %v338
        %v851 = vand.u32 2147483647, %v339
        %v852 = vand.u32 2147483647, %v340
        %v853 = vand.u32 2147483647, %v341
        %v854 = vand.u32 2147483647, %v342
        %v855 = vand.u32 2147483647, %v343
        %v856 = vand.u32 2147483647, %v344
        %v857 = vand.u32 2147483647, %v345
        %v858 = vand.u32 2147483647, %v346
        %v859 = vand.u32 2147483647, %v347
        %v860 = vand.u32 2147483647, %v348
        %v861 = vand.u32 2147483647, %v349
        %v862 = vand.u32 2147483647, %v350
        %v863 = vand.u32 2147483647, %v351
        %v864 = vand.u32 2147483647, %v352
        %v865 = vand.u32 2147483647, %v353
        %v866 = vand.u32 2147483647, %v354
        %v867 = vand.u32 2147483647, %v355
        %v868 = vand.u32 2147483647, %v356
        %v869 = vand.u32 2147483647, %v357
        %v870 = vand.u32 2147483647, %v358
        %v871 = vand.u32 2147483647, %v359
        %v872 = vand.u32 2147483647, %v360
        %v873 = vand.u32 2147483647, %v361
        %v874 = vand.u32 2147483647, %v362
        %v875 = vand.u32 2147483647, %v363
        %v876 = vand.u32 2147483647, %v364
        %v877 = vand.u32 2147483647, %v365
        %v878 = vand.u32 2147483647, %v366
        %v879 = vand.u32 2147483647, %v367
        %v880 = vand.u32 2147483647, %v368
        %v881 = vand.u32 2147483647, %v369
        %v882 = vand.u32 2147483647, %v370
        %v883 = vand.u32 2147483647, %v371
        %v884 = vand.u32 2147483647, %v372
        %v885 = vand.u32 2147483647, %v373
        %v886 = vand.u32 2147483647, %v374
        %v887 = vand.u32 2147483647, %v375
        %v888 = vand.u32 2147483647, %v376
        %v889 = vand.u32 2147483647, %v377
        %v890 = vand.u32 2147483647, %v378
        %v891 = vand.u32 2147483647, %v379
        %v892 = vand.u32 2147483647, %v380
        %v893 = vand.u32 2147483647, %v381
        %v894 = vand.u32 2147483647, %v382
        %v895 = vand.u32 2147483647, %v383
        %v896 = vand.u32 2147483647, %v384
        %v897 = vand.u32 2147483647, %v385
        %v898 = vand.u32 2147483647, %v386
        %v899 = vand.u32 2147483647, %v387
        %v900 = vand.u32 2147483647, %v388
        %v901 = vand.u32 2147483647, %v389
        %v902 = vand.u32 2147483647, %v390
        %v903 = vand.u32 2147483647, %v391
        %v904 = vand.u32 2147483647, %v392
        %v905 = vand.u32 2147483647, %v393
        %v906 = vand.u32 2147483647, %v394
        %v907 = vand.u32 2147483647, %v395
        %v908 = vand.u32 2147483647, %v396
        %v909 = vand.u32 2147483647, %v397
        %v910 = vand.u32 2147483647, %v398
        %v911 = vand.u32 2147483647, %v399
        %v912 = vand.u32 2147483647, %v400
        %v913 = vand.u32 2147483647, %v401
        %v914 = vand.u32 2147483647, %v402
        %v915 = vand.u32 2147483647, %v403
        %v916 = vand.u32 2147483647, %v404
        %v917 = vand.u32 2147483647, %v405
        %v918 = vand.u32 2147483647, %v406
        %v919 = vand.u32 2147483647, %v407
        %v920 = vand.u32 2147483647, %v408
        %v921 = vand.u32 2147483647, %v409
        %v922 = vand.u32 2147483647, %v410
        %v923 = vand.u32 2147483647, %v411
        %v924 = vand.u32 2147483647, %v412
        %v925 = vand.u32 2147483647, %v413
        %v926 = vand.u32 2147483647, %v414
        %v927 = vand.u32 2147483647, %v415
        %v928 = vand.u32 2147483647, %v416
        %v929 = vand.u32 2147483647, %v417
        %v930 = vand.u32 2147483647, %v418
        %v931 = vand.u32 2147483647, %v419
        %v932 = vand.u32 2147483647, %v420
        %v933 = vand.u32 2147483647, %v421
        %v934 = vand.u32 2147483647, %v422
        %v935 = vand.u32 2147483647, %v423
        %v936 = vand.u32 2147483647, %v424
        %v937 = vand.u32 2147483647, %v425
        %v938 = vand.u32 2147483647, %v426
        %v939 = vand.u32 2147483647, %v427
        %v940 = vand.u32 2147483647, %v428
        %v941 = vand.u32 2147483647, %v429
        %v942 = vand.u32 2147483647, %v430
        %v943 = vand.u32 2147483647, %v431
        %v944 = vand.u32 2147483647, %v432
        %v945 = vand.u32 2147483647, %v433
        %v946 = vand.u32 2147483647, %v434
        %v947 = vand.u32 2147483647, %v435
        %v948 = vand.u32 2147483647, %v436
        %v949 = vand.u32 2147483647, %v437
        %v950 = vand.u32 2147483647, %v438
        %v951 = vand.u32 2147483647, %v439
        %v952 = vand.u32 2147483647, %v440
        %v953 = vand.u32 2147483647, %v441
        %v954 = vand.u32 2147483647, %v442
        %v955 = vand.u32 2147483647, %v443
        %v956 = vand.u32 2147483647, %v444
        %v957 = vand.u32 2147483647, %v445
        %v958 = vand.u32 2147483647, %v446
        %v959 = vand.u32 2147483647, %v447
        %v960 = vand.u32 2147483647, %v448
        %v961 = vand.u32 2147483647, %v449
        %v962 = vand.u32 2147483647, %v450
        %v963 = vand.u32 2147483647, %v451
        %v964 = vand.u32 2147483647, %v452
        %v965 = vand.u32 2147483647, %v453
        %v966 = vand.u32 2147483647, %v454
        %v967 = vand.u32 2147483647, %v455
        %v968 = vand.u32 2147483647, %v456
        %v969 = vand.u32 2147483647, %v457
        %v970 = vand.u32 2147483647, %v458
        %v971 = vand.u32 2147483647, %v459
        %v972 = vand.u32 2147483647, %v460
        %v973 = vand.u32 2147483647, %v461
        %v974 = vand.u32 2147483647, %v462
        %v975 = vand.u32 2147483647, %v463
        %v976 = vand.u32 2147483647, %v464
        %v977 = vand.u32 2147483647, %v465
        %v978 = vand.u32 2147483647, %v466
        %v979 = vand.u32 2147483647, %v467
        %v980 = vand.u32 2147483647, %v468
        %v981 = vand.u32 2147483647, %v469
        %v982 = vand.u32 2147483647, %v470
        %v983 = vand.u32 2147483647, %v471
        %v984 = vand.u32 2147483647, %v472
        %v985 = vand.u32 2147483647, %v473
        %v986 = vand.u32 2147483647, %v474
        %v987 = vand.u32 2147483647, %v475
        %v988 = vand.u32 2147483647, %v476
        %v989 = vand.u32 2147483647, %v477
        %v990 = vand.u32 2147483647, %v478
        %v991 = vand.u32 2147483647, %v479
        %v992 = vand.u32 2147483647, %v480
        %v993 = vand.u32 2147483647, %v481
        %v994 = vand.u32 2147483647, %v482
        %v995 = vand.u32 2147483647, %v483
        %v996 = vand.u32 2147483647, %v484
        %v997 = vand.u32 2147483647, %v485
        %v998 = vand.u32 2147483647, %v486
        %v999 = vand.u32 2147483647, %v487
        %v1000 = vand.u32 2147483647, %v488
        %v1001 = vand.u32 2147483647, %v489
        %v1002 = vand.u32 2147483647, %v490
        %v1003 = vand.u32 2147483647, %v491
        %v1004 = vand.u32 2147483647, %v492
        %v1005 = vand.u32 2147483647, %v493
        %v1006 = vand.u32 2147483647, %v494
        %v1007 = vand.u32 2147483647, %v495
        %v1008 = vand.u32 2147483647, %v496
        %v1009 = vand.u32 2147483647, %v497
        %v1010 = vand.u32 2147483647, %v498
        %v1011 = vand.u32 2147483647, %v499
        %v1012 = vand.u32 2147483647, %v500
        %v1013 = vand.u32 2147483647, %v501
        %v1014 = vand.u32 2147483647, %v502
        %v1015 = vand.u32 2147483647, %v503
        %v1016 = vand.u32 2147483647, %v504
        %v1017 = vand.u32 2147483647, %v505
        %v1018 = vand.u32 2147483647, %v506
        %v1019 = vand.u32 2147483647, %v507
        %v1020 = vand.u32 2147483647, %v508
        %v1021 = vand.u32 2147483647, %v509
        %v1022 = vand.u32 2147483647, %v510
        %v1023 = vand.u32 2147483647, %v511
        %v1024 = vand.u32 2147483647, %v512
        %v1025 = vand.u32 2147483647, %v513
        %v1026 = vand.u32 2147483647, %v514
        %v1027 = vand.u32 2147483647, %v515
        %v1028 = vand.u32 2147483647, %v516
        %v1029 = vand.u32 2147483647, %v517
        %v1030 = vand.u32 2147483647, %v518
        %v1031 = vand.u32 2147483647, %v519
        %v1032 = vand.u32 2147483647, %v520
        %v1033 = vand.u32 2147483647, %v521
        %v1034 = vand.u32 2147483647, %v522
        %v1035 = vand.u32 2147483647, %v523
        %v1036 = vand.u32 2147483647, %v524
        %v1037 = vand.u32 2147483647, %v525
        %v1038 = vand.u32 2147483647, %v526
        %v1039 = vand.u32 2147483647, %v527
        %v1040 = vand.u32 2147483647, %v528
        %v1041 = vand.u32 2147483647, %v529
        %v1042 = vand.u32 2147483647, %v530
        %v1043 = vand.u32 2147483647, %v531
        %v1044 = vand.u32 2147483647, %v532
        %v1045 = vand.u32 2147483647, %v533
        %v1046 = vand.u32 2147483647, %v534
        %v1047 = vand.u32 2147483647, %v535
        %v1048 = vand.u32 2147483647, %v536
        %v1049 = vand.u32 2147483647, %v537
        %v1050 = vand.u32 2147483647, %v538
        %v1051 = vand.u32 2147483647, %v539
        %v1052 = vand.u32 2147483647, %v540
        %v1053 = vand.u32 2147483647, %v541
        %v1054 = vand.u32 2147483647, %v542
        %v1055 = vand.u32 2147483647, %v543
        %v1056 = vand.u32 2147483647, %v544
        %v1057 = vand.u32 2147483647, %v545
        %v1058 = vand.u32 2147483647, %v546
        %v1059 = vand.u32 2147483647, %v547
        %v1060 = vand.u32 2147483647, %v548
        %v1061 = vand.u32 2147483647, %v549
        %v1062 = vand.u32 2147483647, %v550
        %v1063 = vand.u32 2147483647, %v551
        %v1064 = vand.u32 2147483647, %v552
        %v1065 = vand.u32 2147483647, %v553
        %v1066 = vand.u32 2147483647, %v554
        %v1067 = vand.u32 2147483647, %v555
        %v1068 = vand.u32 2147483647, %v556
        %v1069 = vand.u32 2147483647, %v557
        %v1070 = vand.u32 2147483647, %v558
        %v1071 = vand.u32 2147483647, %v559
        %v1072 = vand.u32 2147483647, %v560
        %v1073 = vand.u32 2147483647, %v561
        %v1074 = vand.u32 2147483647, %v562
        %v1075 = vand.u32 2147483647, %v563
        %v1076 = vand.u32 2147483647, %v564
        %v1077 = vand.u32 2147483647, %v565
        %v1078 = vand.u32 2147483647, %v566
        %v1079 = vand.u32 2147483647, %v567
        %v1080 = vand.u32 2147483647, %v568
        %v1081 = vand.u32 2147483647, %v569
        %v1082 = vand.u32 2147483647, %v570
        %v1083 = vand.u32 2147483647, %v571
        %v1084 = vand.u32 2147483647, %v572
        %v1085 = vand.u32 2147483647, %v573
        %v1086 = vand.u32 2147483647, %v574
        %v1087 = vand.u32 2147483647, %v575
        %v1088 = vand.u32 2147483647, %v576
        %v1089 = vand.u32 2147483647, %v577
        %v1090 = vand.u32 2147483647, %v578
        %v1091 = vand.u32 2147483647, %v579
        %v1092 = vand.u32 2147483647, %v580
        %v1093 = vand.u32 2147483647, %v581
        %v1094 = vand.u32 2147483647, %v582
        %v1095 = vand.u32 2147483647, %v583
        %v1096 = vand.u32 2147483647, %v584
        %v1097 = vand.u32 2147483647, %v585
        %v1098 = vand.u32 2147483647, %v586
        %v1099 = vand.u32 2147483647, %v587
        %v1100 = vand.u32 2147483647, %v588
        %v1101 = vand.u32 2147483647, %v589
        %v1102 = vand.u32 2147483647, %v590
        %v1103 = vand.u32 2147483647, %v591
        %v1104 = vand.u32 2147483647, %v592
        %v1105 = vand.u32 2147483647, %v593
        %v1106 = vand.u32 2147483647, %v594
        %v1107 = vand.u32 2147483647, %v595
        %v1108 = vand.u32 2147483647, %v596
        %v1109 = vand.u32 2147483647, %v597
        %v1110 = vand.u32 2147483647, %v598
        %v1111 = vand.u32 2147483647, %v599
        %v1112 = vand.u32 2147483647, %v600
        %v1113 = vand.u32 2147483647, %v601
        %v1114 = vand.u32 2147483647, %v602
        %v1115 = vand.u32 2147483647, %v603
        %v1116 = vand.u32 2147483647, %v604
        %v1117 = vand.u32 2147483647, %v605
        %v1118 = vand.u32 2147483647, %v606
        %v1119 = vand.u32 2147483647, %v607
        %v1120 = vand.u32 2147483647, %v608
        %v1121 = vand.u32 2147483647, %v609
        %v1122 = vand.u32 2147483647, %v610
        %v1123 = vand.u32 2147483647, %v611
        %v1124 = vand.u32 2147483647, %v612
        %v1125 = vand.u32 2147483647, %v613
        %v1126 = vand.u32 2147483647, %v614
        %v1127 = vand.u32 2147483647, %v615
        %v1128 = vand.u32 2147483647, %v616
        %v1129 = vand.u32 2147483647, %v617
        %v1130 = vand.u32 2147483647, %v618
        %v1131 = vand.u32 2147483647, %v619
        %v1132 = vand.u32 2147483647, %v620
        %v1133 = vand.u32 2147483647, %v621
        %v1134 = vand.u32 2147483647, %v622
        %v1135 = vand.u32 2147483647, %v623
        %v1136 = vand.u32 2147483647, %v624
        %v1137 = vand.u32 2147483647, %v625
        %v1138 = vand.u32 2147483647, %v626
        %v1139 = vand.u32 2147483647, %v627
        %v1140 = vand.u32 2147483647, %v628
        %v1141 = vand.u32 2147483647, %v629
        %v1142 = vand.u32 2147483647, %v630
        %v1143 = vand.u32 2147483647, %v631
        %v1144 = vand.u32 2147483647, %v632
        %v1145 = vand.u32 2147483647, %v633
        %v1146 = vand.u32 2147483647, %v634
        %v1147 = vand.u32 2147483647, %v635
        %v1148 = vand.u32 2147483647, %v636
        %v1149 = vand.u32 2147483647, %v637
        %v1150 = vand.u32 2147483647, %v638
        %v1151 = vand.u32 2147483647, %v639
        %v1152 = vand.u32 2147483647, %v640
        %v1153 = vand.u32 2147483647, %v641
        %v1154 = vand.u32 2147483647, %v642
        %v1155 = vand.u32 2147483647, %v643
        %v1156 = vand.u32 2147483647, %v644
        %v1157 = vand.u32 2147483647, %v645
        %v1158 = vand.u32 2147483647, %v646
        %v1159 = vand.u32 2147483647, %v647
        %v1160 = vand.u32 2147483647, %v648
        %v1161 = vand.u32 2147483647, %v649
        %v1162 = vand.u32 2147483647, %v650
        %v1163 = vand.u32 2147483647, %v651
        %v1164 = vand.u32 2147483647, %v652
        %v1165 = vand.u32 2147483647, %v653
        %v1166 = vand.u32 2147483647, %v654
        %v1167 = vand.u32 2147483647, %v655
        %v1168 = vand.u32 2147483647, %v656
        %v1169 = vand.u32 2147483647, %v657
        %v1170 = vand.u32 2147483647, %v658
        %v1171 = vand.u32 2147483647, %v659
        %v1172 = vand.u32 2147483647, %v660
        %v1173 = vand.u32 2147483647, %v661
        %v1174 = vand.u32 2147483647, %v662
        %v1175 = vand.u32 2147483647, %v663
        %v1176 = vand.u32 2147483647, %v664
        %v1177 = vand.u32 2147483647, %v665
        %v1178 = vand.u32 2147483647, %v666
        %v1179 = vand.u32 2147483647, %v667
        %v1180 = vand.u32 2147483647, %v668
        %v1181 = vand.u32 2147483647, %v669
        %v1182 = vadd.f32 %v670, %v671
        %v1183 = vadd.f32 %v1182, %v672
        %v1184 = vadd.f32 %v1183, %v673
        %v1185 = vadd.f32 %v1184, %v674
        %v1186 = vadd.f32 %v1185, %v675
        %v1187 = vadd.f32 %v1186, %v676
        %v1188 = vadd.f32 %v1187, %v677
        %v1189 = vadd.f32 %v1188, %v678
        %v1190 = vadd.f32 %v1189, %v679
        %v1191 = vadd.f32 %v1190, %v680
        %v1192 = vadd.f32 %v1191, %v681
        %v1193 = vadd.f32 %v1192, %v682
        %v1194 = vadd.f32 %v1193, %v683
        %v1195 = vadd.f32 %v1194, %v684
        %v1196 = vadd.f32 %v1195, %v685
        %v1197 = vadd.f32 %v1196, %v686
        %v1198 = vadd.f32 %v1197, %v687
        %v1199 = vadd.f32 %v1198, %v688
        %v1200 = vadd.f32 %v1199, %v689
        %v1201 = vadd.f32 %v1200, %v690
        %v1202 = vadd.f32 %v1201, %v691
        %v1203 = vadd.f32 %v1202, %v692
        %v1204 = vadd.f32 %v1203, %v693
        %v1205 = vadd.f32 %v1204, %v694
        %v1206 = vadd.f32 %v1205, %v695
        %v1207 = vadd.f32 %v1206, %v696
        %v1208 = vadd.f32 %v1207, %v697
        %v1209 = vadd.f32 %v1208, %v698
        %v1210 = vadd.f32 %v1209, %v699
        %v1211 = vadd.f32 %v1210, %v700
        %v1212 = vadd.f32 %v1211, %v701
        %v1213 = vadd.f32 %v1212, %v702
        %v1214 = vadd.f32 %v1213, %v703
        %v1215 = vadd.f32 %v1214, %v704
        %v1216 = vadd.f32 %v1215, %v705
        %v1217 = vadd.f32 %v1216, %v706
        %v1218 = vadd.f32 %v1217, %v707
        %v1219 = vadd.f32 %v1218, %v708
        %v1220 = vadd.f32 %v1219, %v709
        %v1221 = vadd.f32 %v1220, %v710
        %v1222 = vadd.f32 %v1221, %v711
        %v1223 = vadd.f32 %v1222, %v712
        %v1224 = vadd.f32 %v1223, %v713
        %v1225 = vadd.f32 %v1224, %v714
        %v1226 = vadd.f32 %v1225, %v715
        %v1227 = vadd.f32 %v1226, %v716
        %v1228 = vadd.f32 %v1227, %v717
        %v1229 = vadd.f32 %v1228, %v718
        %v1230 = vadd.f32 %v1229, %v719
        %v1231 = vadd.f32 %v1230, %v720
        %v1232 = vadd.f32 %v1231, %v721
        %v1233 = vadd.f32 %v1232, %v722
        %v1234 = vadd.f32 %v1233, %v723
        %v1235 = vadd.f32 %v1234, %v724
        %v1236 = vadd.f32 %v1235, %v725
        %v1237 = vadd.f32 %v1236, %v726
        %v1238 = vadd.f32 %v1237, %v727
        %v1239 = vadd.f32 %v1238, %v728
        %v1240 = vadd.f32 %v1239, %v729
        %v1241 = vadd.f32 %v1240, %v730
        %v1242 = vadd.f32 %v1241, %v731
        %v1243 = vadd.f32 %v1242, %v732
        %v1244 = vadd.f32 %v1243, %v733
        %v1245 = vadd.f32 %v1244, %v734
        %v1246 = vadd.f32 %v1245, %v735
        %v1247 = vadd.f32 %v1246, %v736
        %v1248 = vadd.f32 %v1247, %v737
        %v1249 = vadd.f32 %v1248, %v738
        %v1250 = vadd.f32 %v1249, %v739
        %v1251 = vadd.f32 %v1250, %v740
        %v1252 = vadd.f32 %v1251, %v741
        %v1253 = vadd.f32 %v1252, %v742
        %v1254 = vadd.f32 %v1253, %v743
        %v1255 = vadd.f32 %v1254, %v744
        %v1256 = vadd.f32 %v1255, %v745
        %v1257 = vadd.f32 %v1256, %v746
        %v1258 = vadd.f32 %v1257, %v747
        %v1259 = vadd.f32 %v1258, %v748
        %v1260 = vadd.f32 %v1259, %v749
        %v1261 = vadd.f32 %v1260, %v750
        %v1262 = vadd.f32 %v1261, %v751
        %v1263 = vadd.f32 %v1262, %v752
        %v1264 = vadd.f32 %v1263, %v753
        %v1265 = vadd.f32 %v1264, %v754
        %v1266 = vadd.f32 %v1265, %v755
        %v1267 = vadd.f32 %v1266, %v756
        %v1268 = vadd.f32 %v1267, %v757
        %v1269 = vadd.f32 %v1268, %v758
        %v1270 = vadd.f32 %v1269, %v759
        %v1271 = vadd.f32 %v1270, %v760
        %v1272 = vadd.f32 %v1271, %v761
        %v1273 = vadd.f32 %v1272, %v762
        %v1274 = vadd.f32 %v1273, %v763
        %v1275 = vadd.f32 %v1274, %v764
        %v1276 = vadd.f32 %v1275, %v765
        %v1277 = vadd.f32 %v1276, %v766
        %v1278 = vadd.f32 %v1277, %v767
        %v1279 = vadd.f32 %v1278, %v768
        %v1280 = vadd.f32 %v1279, %v769
        %v1281 = vadd.f32 %v1280, %v770
        %v1282 = vadd.f32 %v1281, %v771
        %v1283 = vadd.f32 %v1282, %v772
        %v1284 = vadd.f32 %v1283, %v773
        %v1285 = vadd.f32 %v1284, %v774
        %v1286 = vadd.f32 %v1285, %v775
        %v1287 = vadd.f32 %v1286, %v776
        %v1288 = vadd.f32 %v1287, %v777
        %v1289 = vadd.f32 %v1288, %v778
        %v1290 = vadd.f32 %v1289, %v779
        %v1291 = vadd.f32 %v1290, %v780
        %v1292 = vadd.f32 %v1291, %v781
        %v1293 = vadd.f32 %v1292, %v782
        %v1294 = vadd.f32 %v1293, %v783
        %v1295 = vadd.f32 %v1294, %v784
        %v1296 = vadd.f32 %v1295, %v785
        %v1297 = vadd.f32 %v1296, %v786
        %v1298 = vadd.f32 %v1297, %v787
        %v1299 = vadd.f32 %v1298, %v788
        %v1300 = vadd.f32 %v1299, %v789
        %v1301 = vadd.f32 %v1300, %v790
        %v1302 = vadd.f32 %v1301, %v791
        %v1303 = vadd.f32 %v1302, %v792
        %v1304 = vadd.f32 %v1303, %v793
        %v1305 = vadd.f32 %v1304, %v794
        %v1306 = vadd.f32 %v1305, %v795
        %v1307 = vadd.f32 %v1306, %v796
        %v1308 = vadd.f32 %v1307, %v797
        %v1309 = vadd.f32 %v1308, %v798
        %v1310 = vadd.f32 %v1309, %v799
        %v1311 = vadd.f32 %v1310, %v800
        %v1312 = vadd.f32 %v1311, %v801
        %v1313 = vadd.f32 %v1312, %v802
        %v1314 = vadd.f32 %v1313, %v803
        %v1315 = vadd.f32 %v1314, %v804
        %v1316 = vadd.f32 %v1315, %v805
        %v1317 = vadd.f32 %v1316, %v806
        %v1318 = vadd.f32 %v1317, %v807
        %v1319 = vadd.f32 %v1318, %v808
        %v1320 = vadd.f32 %v1319, %v809
        %v1321 = vadd.f32 %v1320, %v810
        %v1322 = vadd.f32 %v1321, %v811
        %v1323 = vadd.f32 %v1322, %v812
        %v1324 = vadd.f32 %v1323, %v813
        %v1325 = vadd.f32 %v1324, %v814
        %v1326 = vadd.f32 %v1325, %v815
        %v1327 = vadd.f32 %v1326, %v816
        %v1328 = vadd.f32 %v1327, %v817
        %v1329 = vadd.f32 %v1328, %v818
        %v1330 = vadd.f32 %v1329, %v819
        %v1331 = vadd.f32 %v1330, %v820
        %v1332 = vadd.f32 %v1331, %v821
        %v1333 = vadd.f32 %v1332, %v822
        %v1334 = vadd.f32 %v1333, %v823
        %v1335 = vadd.f32 %v1334, %v824
        %v1336 = vadd.f32 %v1335, %v825
        %v1337 = vadd.f32 %v1336, %v826
        %v1338 = vadd.f32 %v1337, %v827
        %v1339 = vadd.f32 %v1338, %v828
        %v1340 = vadd.f32 %v1339, %v829
        %v1341 = vadd.f32 %v1340, %v830
        %v1342 = vadd.f32 %v1341, %v831
        %v1343 = vadd.f32 %v1342, %v832
        %v1344 = vadd.f32 %v1343, %v833
        %v1345 = vadd.f32 %v1344, %v834
        %v1346 = vadd.f32 %v1345, %v835
        %v1347 = vadd.f32 %v1346, %v836
        %v1348 = vadd.f32 %v1347, %v837
        %v1349 = vadd.f32 %v1348, %v838
        %v1350 = vadd.f32 %v1349, %v839
        %v1351 = vadd.f32 %v1350, %v840
        %v1352 = vadd.f32 %v1351, %v841
        %v1353 = vadd.f32 %v1352, %v842
        %v1354 = vadd.f32 %v1353, %v843
        %v1355 = vadd.f32 %v1354, %v844
        %v1356 = vadd.f32 %v1355, %v845
        %v1357 = vadd.f32 %v1356, %v846
        %v1358 = vadd.f32 %v1357, %v847
        %v1359 = vadd.f32 %v1358, %v848
        %v1360 = vadd.f32 %v1359, %v849
        %v1361 = vadd.f32 %v1360, %v850
        %v1362 = vadd.f32 %v1361, %v851
        %v1363 = vadd.f32 %v1362, %v852
        %v1364 = vadd.f32 %v1363, %v853
        %v1365 = vadd.f32 %v1364, %v854
        %v1366 = vadd.f32 %v1365, %v855
        %v1367 = vadd.f32 %v1366, %v856
        %v1368 = vadd.f32 %v1367, %v857
        %v1369 = vadd.f32 %v1368, %v858
        %v1370 = vadd.f32 %v1369, %v859
        %v1371 = vadd.f32 %v1370, %v860
        %v1372 = vadd.f32 %v1371, %v861
        %v1373 = vadd.f32 %v1372, %v862
        %v1374 = vadd.f32 %v1373, %v863
        %v1375 = vadd.f32 %v1374, %v864
        %v1376 = vadd.f32 %v1375, %v865
        %v1377 = vadd.f32 %v1376, %v866
        %v1378 = vadd.f32 %v1377, %v867
        %v1379 = vadd.f32 %v1378, %v868
        %v1380 = vadd.f32 %v1379, %v869
        %v1381 = vadd.f32 %v1380, %v870
        %v1382 = vadd.f32 %v1381, %v871
        %v1383 = vadd.f32 %v1382, %v872
        %v1384 = vadd.f32 %v1383, %v873
        %v1385 = vadd.f32 %v1384, %v874
        %v1386 = vadd.f32 %v1385, %v875
        %v1387 = vadd.f32 %v1386, %v876
        %v1388 = vadd.f32 %v1387, %v877
        %v1389 = vadd.f32 %v1388, %v878
        %v1390 = vadd.f32 %v1389, %v879
        %v1391 = vadd.f32 %v1390, %v880
        %v1392 = vadd.f32 %v1391, %v881
        %v1393 = vadd.f32 %v1392, %v882
        %v1394 = vadd.f32 %v1393, %v883
        %v1395 = vadd.f32 %v1394, %v884
        %v1396 = vadd.f32 %v1395, %v885
        %v1397 = vadd.f32 %v1396, %v886
        %v1398 = vadd.f32 %v1397, %v887
        %v1399 = vadd.f32 %v1398, %v888
        %v1400 = vadd.f32 %v1399, %v889
        %v1401 = vadd.f32 %v1400, %v890
        %v1402 = vadd.f32 %v1401, %v891
        %v1403 = vadd.f32 %v1402, %v892
        %v1404 = vadd.f32 %v1403, %v893
        %v1405 = vadd.f32 %v1404, %v894
        %v1406 = vadd.f32 %v1405, %v895
        %v1407 = vadd.f32 %v1406, %v896
        %v1408 = vadd.f32 %v1407, %v897
        %v1409 = vadd.f32 %v1408, %v898
        %v1410 = vadd.f32 %v1409, %v899
        %v1411 = vadd.f32 %v1410, %v900
        %v1412 = vadd.f32 %v1411, %v901
        %v1413 = vadd.f32 %v1412, %v902
        %v1414 = vadd.f32 %v1413, %v903
        %v1415 = vadd.f32 %v1414, %v904
        %v1416 = vadd.f32 %v1415, %v905
        %v1417 = vadd.f32 %v1416, %v906
        %v1418 = vadd.f32 %v1417, %v907
        %v1419 = vadd.f32 %v1418, %v908
        %v1420 = vadd.f32 %v1419, %v909
        %v1421 = vadd.f32 %v1420, %v910
        %v1422 = vadd.f32 %v1421, %v911
        %v1423 = vadd.f32 %v1422, %v912
        %v1424 = vadd.f32 %v1423, %v913
        %v1425 = vadd.f32 %v1424, %v914
        %v1426 = vadd.f32 %v1425, %v915
        %v1427 = vadd.f32 %v1426, %v916
        %v1428 = vadd.f32 %v1427, %v917
        %v1429 = vadd.f32 %v1428, %v918
        %v1430 = vadd.f32 %v1429, %v919
        %v1431 = vadd.f32 %v1430, %v920
        %v1432 = vadd.f32 %v1431, %v921
        %v1433 = vadd.f32 %v1432, %v922
        %v1434 = vadd.f32 %v1433, %v923
        %v1435 = vadd.f32 %v1434, %v924
        %v1436 = vadd.f32 %v1435, %v925
        %v1437 = vadd.f32 %v1436, %v926
        %v1438 = vadd.f32 %v1437, %v927
        %v1439 = vadd.f32 %v1438, %v928
        %v1440 = vadd.f32 %v1439, %v929
        %v1441 = vadd.f32 %v1440, %v930
        %v1442 = vadd.f32 %v1441, %v931
        %v1443 = vadd.f32 %v1442, %v932
        %v1444 = vadd.f32 %v1443, %v933
        %v1445 = vadd.f32 %v1444, %v934
        %v1446 = vadd.f32 %v1445, %v935
        %v1447 = vadd.f32 %v1446, %v936
        %v1448 = vadd.f32 %v1447, %v937
        %v1449 = vadd.f32 %v1448, %v938
        %v1450 = vadd.f32 %v1449, %v939
        %v1451 = vadd.f32 %v1450, %v940
        %v1452 = vadd.f32 %v1451, %v941
        %v1453 = vadd.f32 %v1452, %v942
        %v1454 = vadd.f32 %v1453, %v943
        %v1455 = vadd.f32 %v1454, %v944
        %v1456 = vadd.f32 %v1455, %v945
        %v1457 = vadd.f32 %v1456, %v946
        %v1458 = vadd.f32 %v1457, %v947
        %v1459 = vadd.f32 %v1458, %v948
        %v1460 = vadd.f32 %v1459, %v949
        %v1461 = vadd.f32 %v1460, %v950
        %v1462 = vadd.f32 %v1461, %v951
        %v1463 = vadd.f32 %v1462, %v952
        %v1464 = vadd.f32 %v1463, %v953
        %v1465 = vadd.f32 %v1464, %v954
        %v1466 = vadd.f32 %v1465, %v955
        %v1467 = vadd.f32 %v1466, %v956
        %v1468 = vadd.f32 %v1467, %v957
        %v1469 = vadd.f32 %v1468, %v958
        %v1470 = vadd.f32 %v1469, %v959
        %v1471 = vadd.f32 %v1470, %v960
        %v1472 = vadd.f32 %v1471, %v961
        %v1473 = vadd.f32 %v1472, %v962
        %v1474 = vadd.f32 %v1473, %v963
        %v1475 = vadd.f32 %v1474, %v964
        %v1476 = vadd.f32 %v1475, %v965
        %v1477 = vadd.f32 %v1476, %v966
        %v1478 = vadd.f32 %v1477, %v967
        %v1479 = vadd.f32 %v1478, %v968
        %v1480 = vadd.f32 %v1479, %v969
        %v1481 = vadd.f32 %v1480, %v970
        %v1482 = vadd.f32 %v1481, %v971
        %v1483 = vadd.f32 %v1482, %v972
        %v1484 = vadd.f32 %v1483, %v973
        %v1485 = vadd.f32 %v1484, %v974
        %v1486 = vadd.f32 %v1485, %v975
        %v1487 = vadd.f32 %v1486, %v976
        %v1488 = vadd.f32 %v1487, %v977
        %v1489 = vadd.f32 %v1488, %v978
        %v1490 = vadd.f32 %v1489, %v979
        %v1491 = vadd.f32 %v1490, %v980
        %v1492 = vadd.f32 %v1491, %v981
        %v1493 = vadd.f32 %v1492, %v982
        %v1494 = vadd.f32 %v1493, %v983
        %v1495 = vadd.f32 %v1494, %v984
        %v1496 = vadd.f32 %v1495, %v985
        %v1497 = vadd.f32 %v1496, %v986
        %v1498 = vadd.f32 %v1497, %v987
        %v1499 = vadd.f32 %v1498, %v988
        %v1500 = vadd.f32 %v1499, %v989
        %v1501 = vadd.f32 %v1500, %v990
        %v1502 = vadd.f32 %v1501, %v991
        %v1503 = vadd.f32 %v1502, %v992
        %v1504 = vadd.f32 %v1503, %v993
        %v1505 = vadd.f32 %v1504, %v994
        %v1506 = vadd.f32 %v1505, %v995
        %v1507 = vadd.f32 %v1506, %v996
        %v1508 = vadd.f32 %v1507, %v997
        %v1509 = vadd.f32 %v1508, %v998
        %v1510 = vadd.f32 %v1509, %v999
        %v1511 = vadd.f32 %v1510, %v1000
        %v1512 = vadd.f32 %v1511, %v1001
        %v1513 = vadd.f32 %v1512, %v1002
        %v1514 = vadd.f32 %v1513, %v1003
        %v1515 = vadd.f32 %v1514, %v1004
        %v1516 = vadd.f32 %v1515, %v1005
        %v1517 = vadd.f32 %v1516, %v1006
        %v1518 = vadd.f32 %v1517, %v1007
        %v1519 = vadd.f32 %v1518, %v1008
        %v1520 = vadd.f32 %v1519, %v1009
        %v1521 = vadd.f32 %v1520, %v1010
        %v1522 = vadd.f32 %v1521, %v1011
        %v1523 = vadd.f32 %v1522, %v1012
        %v1524 = vadd.f32 %v1523, %v1013
        %v1525 = vadd.f32 %v1524, %v1014
        %v1526 = vadd.f32 %v1525, %v1015
        %v1527 = vadd.f32 %v1526, %v1016
        %v1528 = vadd.f32 %v1527, %v1017
        %v1529 = vadd.f32 %v1528, %v1018
        %v1530 = vadd.f32 %v1529, %v1019
        %v1531 = vadd.f32 %v1530, %v1020
        %v1532 = vadd.f32 %v1531, %v1021
        %v1533 = vadd.f32 %v1532, %v1022
        %v1534 = vadd.f32 %v1533, %v1023
        %v1535 = vadd.f32 %v1534, %v1024
        %v1536 = vadd.f32 %v1535, %v1025
        %v1537 = vadd.f32 %v1536, %v1026
        %v1538 = vadd.f32 %v1537, %v1027
        %v1539 = vadd.f32 %v1538, %v1028
        %v1540 = vadd.f32 %v1539, %v1029
        %v1541 = vadd.f32 %v1540, %v1030
        %v1542 = vadd.f32 %v1541, %v1031
        %v1543 = vadd.f32 %v1542, %v1032
        %v1544 = vadd.f32 %v1543, %v1033
        %v1545 = vadd.f32 %v1544, %v1034
        %v1546 = vadd.f32 %v1545, %v1035
        %v1547 = vadd.f32 %v1546, %v1036
        %v1548 = vadd.f32 %v1547, %v1037
        %v1549 = vadd.f32 %v1548, %v1038
        %v1550 = vadd.f32 %v1549, %v1039
        %v1551 = vadd.f32 %v1550, %v1040
        %v1552 = vadd.f32 %v1551, %v1041
        %v1553 = vadd.f32 %v1552, %v1042
        %v1554 = vadd.f32 %v1553, %v1043
        %v1555 = vadd.f32 %v1554, %v1044
        %v1556 = vadd.f32 %v1555, %v1045
        %v1557 = vadd.f32 %v1556, %v1046
        %v1558 = vadd.f32 %v1557, %v1047
        %v1559 = vadd.f32 %v1558, %v1048
        %v1560 = vadd.f32 %v1559, %v1049
        %v1561 = vadd.f32 %v1560, %v1050
        %v1562 = vadd.f32 %v1561, %v1051
        %v1563 = vadd.f32 %v1562, %v1052
        %v1564 = vadd.f32 %v1563, %v1053
        %v1565 = vadd.f32 %v1564, %v1054
        %v1566 = vadd.f32 %v1565, %v1055
        %v1567 = vadd.f32 %v1566, %v1056
        %v1568 = vadd.f32 %v1567, %v1057
        %v1569 = vadd.f32 %v1568, %v1058
        %v1570 = vadd.f32 %v1569, %v1059
        %v1571 = vadd.f32 %v1570, %v1060
        %v1572 = vadd.f32 %v1571, %v1061
        %v1573 = vadd.f32 %v1572, %v1062
        %v1574 = vadd.f32 %v1573, %v1063
        %v1575 = vadd.f32 %v1574, %v1064
        %v1576 = vadd.f32 %v1575, %v1065
        %v1577 = vadd.f32 %v1576, %v1066
        %v1578 = vadd.f32 %v1577, %v1067
        %v1579 = vadd.f32 %v1578, %v1068
        %v1580 = vadd.f32 %v1579, %v1069
        %v1581 = vadd.f32 %v1580, %v1070
        %v1582 = vadd.f32 %v1581, %v1071
        %v1583 = vadd.f32 %v1582, %v1072
        %v1584 = vadd.f32 %v1583, %v1073
        %v1585 = vadd.f32 %v1584, %v1074
        %v1586 = vadd.f32 %v1585, %v1075
        %v1587 = vadd.f32 %v1586, %v1076
        %v1588 = vadd.f32 %v1587, %v1077
        %v1589 = vadd.f32 %v1588, %v1078
        %v1590 = vadd.f32 %v1589, %v1079
        %v1591 = vadd.f32 %v1590, %v1080
        %v1592 = vadd.f32 %v1591, %v1081
        %v1593 = vadd.f32 %v1592, %v1082
        %v1594 = vadd.f32 %v1593, %v1083
        %v1595 = vadd.f32 %v1594, %v1084
        %v1596 = vadd.f32 %v1595, %v1085
        %v1597 = vadd.f32 %v1596, %v1086
        %v1598 = vadd.f32 %v1597, %v1087
        %v1599 = vadd.f32 %v1598, %v1088
        %v1600 = vadd.f32 %v1599, %v1089
        %v1601 = vadd.f32 %v1600, %v1090
        %v1602 = vadd.f32 %v1601, %v1091
        %v1603 = vadd.f32 %v1602, %v1092
        %v1604 = vadd.f32 %v1603, %v1093
        %v1605 = vadd.f32 %v1604, %v1094
        %v1606 = vadd.f32 %v1605, %v1095
        %v1607 = vadd.f32 %v1606, %v1096
        %v1608 = vadd.f32 %v1607, %v1097
        %v1609 = vadd.f32 %v1608, %v1098
        %v1610 = vadd.f32 %v1609, %v1099
        %v1611 = vadd.f32 %v1610, %v1100
        %v1612 = vadd.f32 %v1611, %v1101
        %v1613 = vadd.f32 %v1612, %v1102
        %v1614 = vadd.f32 %v1613, %v1103
        %v1615 = vadd.f32 %v1614, %v1104
        %v1616 = vadd.f32 %v1615, %v1105
        %v1617 = vadd.f32 %v1616, %v1106
        %v1618 = vadd.f32 %v1617, %v1107
        %v1619 = vadd.f32 %v1618, %v1108
        %v1620 = vadd.f32 %v1619, %v1109
        %v1621 = vadd.f32 %v1620, %v1110
        %v1622 = vadd.f32 %v1621, %v1111
        %v1623 = vadd.f32 %v1622, %v1112
        %v1624 = vadd.f32 %v1623, %v1113
        %v1625 = vadd.f32 %v1624, %v1114
        %v1626 = vadd.f32 %v1625, %v1115
        %v1627 = vadd.f32 %v1626, %v1116
        %v1628 = vadd.f32 %v1627, %v1117
        %v1629 = vadd.f32 %v1628, %v1118
        %v1630 = vadd.f32 %v1629, %v1119
        %v1631 = vadd.f32 %v1630, %v1120
        %v1632 = vadd.f32 %v1631, %v1121
        %v1633 = vadd.f32 %v1632, %v1122
        %v1634 = vadd.f32 %v1633, %v1123
        %v1635 = vadd.f32 %v1634, %v1124
        %v1636 = vadd.f32 %v1635, %v1125
        %v1637 = vadd.f32 %v1636, %v1126
        %v1638 = vadd.f32 %v1637, %v1127
        %v1639 = vadd.f32 %v1638, %v1128
        %v1640 = vadd.f32 %v1639, %v1129
        %v1641 = vadd.f32 %v1640, %v1130
        %v1642 = vadd.f32 %v1641, %v1131
        %v1643 = vadd.f32 %v1642, %v1132
        %v1644 = vadd.f32 %v1643, %v1133
        %v1645 = vadd.f32 %v1644, %v1134
        %v1646 = vadd.f32 %v1645, %v1135
        %v1647 = vadd.f32 %v1646, %v1136
        %v1648 = vadd.f32 %v1647, %v1137
        %v1649 = vadd.f32 %v1648, %v1138
        %v1650 = vadd.f32 %v1649, %v1139
        %v1651 = vadd.f32 %v1650, %v1140
        %v1652 = vadd.f32 %v1651, %v1141
        %v1653 = vadd.f32 %v1652, %v1142
        %v1654 = vadd.f32 %v1653, %v1143
        %v1655 = vadd.f32 %v1654, %v1144
        %v1656 = vadd.f32 %v1655, %v1145
        %v1657 = vadd.f32 %v1656, %v1146
        %v1658 = vadd.f32 %v1657, %v1147
        %v1659 = vadd.f32 %v1658, %v1148
        %v1660 = vadd.f32 %v1659, %v1149
        %v1661 = vadd.f32 %v1660, %v1150
        %v1662 = vadd.f32 %v1661, %v1151
        %v1663 = vadd.f32 %v1662, %v1152
        %v1664 = vadd.f32 %v1663, %v1153
        %v1665 = vadd.f32 %v1664, %v1154
        %v1666 = vadd.f32 %v1665, %v1155
        %v1667 = vadd.f32 %v1666, %v1156
        %v1668 = vadd.f32 %v1667, %v1157
        %v1669 = vadd.f32 %v1668, %v1158
        %v1670 = vadd.f32 %v1669, %v1159
        %v1671 = vadd.f32 %v1670, %v1160
        %v1672 = vadd.f32 %v1671, %v1161
        %v1673 = vadd.f32 %v1672, %v1162
        %v1674 = vadd.f32 %v1673, %v1163
        %v1675 = vadd.f32 %v1674, %v1164
        %v1676 = vadd.f32 %v1675, %v1165
        %v1677 = vadd.f32 %v1676, %v1166
        %v1678 = vadd.f32 %v1677, %v1167
        %v1679 = vadd.f32 %v1678, %v1168
        %v1680 = vadd.f32 %v1679, %v1169
        %v1681 = vadd.f32 %v1680, %v1170
        %v1682 = vadd.f32 %v1681, %v1171
        %v1683 = vadd.f32 %v1682, %v1172
        %v1684 = vadd.f32 %v1683, %v1173
        %v1685 = vadd.f32 %v1684, %v1174
        %v1686 = vadd.f32 %v1685, %v1175
        %v1687 = vadd.f32 %v1686, %v1176
        %v1688 = vadd.f32 %v1687, %v1177
        %v1689 = vadd.f32 %v1688, %v1178
        %v1690 = vadd.f32 %v1689, %v1179
        %v1691 = vadd.f32 %v1690, %v1180
        %v1692 = vadd.f32 %v1691, %v1181
        %1693 = vadd.xlane.f32.xlu0 %v1692
        %v1694 = vpop.xlane.xlu0 %1693
        %v1695 = vrot.slane %v1694, 4
        %v1696 = vadd.f32 %v1694, %v1695
        %v1697 = vrot.slane %v1696, 2
        %v1698 = vadd.f32 %v1696, %v1697
        %v1699 = vrot.slane %v1698, 1
        %v1700 = vadd.f32 %v1698, %v1699
        %s1701 = vtos %v1700
        %v1702 = vld [vmem:[%s152] sm:$0x1]
        %v1703 = vstv %s1701
        %v1704 = vadd.f32 %v1702, %v1703
        %vm1705 = vcmask 0
        %1706 = vst.msk [vmem:[%s152] sm:$0x1] %vm1705, %v1704
        %p1707 = scmp.lt.s32.totalorder %s19, 1
        %s1708 = scalar_select %p1707, %s19, 1
        %s1709 = smul.addr %s1708, 8
        %s1710 = scalar_lea.vmem %s1, %s1709
        // Predicated region
        $region33: #{reg_l1_loss.7} parent=23 // pred_check
          %p1711 = pneg %p73
        $region34: #{reg_l1_loss.7} parent=23 // pred_check_branch
          %1713 = sbr.rel (%p1711) target = $region36
        $region35: #{reg_l1_loss.7} parent=23 // pred_region
          _
        $region36: #{reg_l1_loss.7} parent=23 // pred_fallthru
          _
      $region24: #{reg_l1_loss.7} parent=5 // pred_fallthru
        _
      %p1714 = scmp.le.s32.totalorder 2, %s10
      // Predicated region
      $region37: #{reg_l1_loss.7} parent=5 // pred_check
        %p1715 = pneg %p1714
      $region38: #{reg_l1_loss.7} parent=5 // pred_check_branch
        %1717 = sbr.rel (%p1715) target = $region40
      $region39: #{reg_l1_loss.7} parent=5 // pred_region
        %s1718 = ssub.s32 %s10, 2
        // Predicated region
        $region41: #{reg_l1_loss.7} parent=39 // pred_check
          %p1719 = pneg %p79
        $region42: #{reg_l1_loss.7} parent=39 // pred_check_branch
          %1721 = sbr.rel (%p1719) target = $region44
        $region43: #{reg_l1_loss.7} parent=39 // pred_region
          %p1722 = scmp.lt.s32.totalorder %s21, 1
          %s1723 = scalar_select %p1722, %s21, 1
          %s1724 = smul.addr %s1723, 8
          %s1725 = scalar_lea.vmem %s1, %s1724
        $region44: #{reg_l1_loss.7} parent=39 // pred_fallthru
          _
      $region40: #{reg_l1_loss.7} parent=5 // pred_fallthru
        _
    $region6: #{reg_l1_loss.7} parent=1 // loop_footer
      %s14 = sadd.s32 1, %s10
    $region7: #{reg_l1_loss.7} parent=1 // loop_footer_branch
      %9 = sbr.rel target = $region3
    $region8: #{reg_l1_loss.7} parent=1 // loop_exit
      _
    %1726 = vsyncpa [#allocation3], 1
    %s1727 = scalar_lea.sflag [#allocation3], 1
    %1728 = vsyncpa %s1727, 1

</llo_original>
